<compile_context>
chip_gen: v7x
topology: tpu7x:2x2x1
jax: 0.10.0
libtpu: 0.0.40
codegen_flags: <defaults>
</compile_context>

<pallas_src>
import jax
import jax.numpy as jnp
from jax import lax
from jax.experimental import pallas as pl
from jax.experimental.pallas import tpu as pltpu

EPS = 1e-8
HIDDEN = 768
FF = 512
LANE = 128


def _round_up(x, m):
    return (x + m - 1) // m * m


def _cdiv(a, b):
    return -(-a // b)


def _withaim_kernel(h_ref, w1_ref, b1_ref, yst_ref, wmx_ref, wmc_ref, bm_ref,
                    out_ref):
    """Fused: linear1 + ReLU, cosine sim vs precomputed y_s, final linear, log-softmax."""
    # x = ReLU(h @ W1t + b1)                      -> [tm, 512]  (bf16 in, f32 acc)
    x = jnp.dot(h_ref[...], w1_ref[...], preferred_element_type=jnp.float32)
    x = jnp.maximum(x + b1_ref[...], 0.0)

    # 1 / max(||x||, eps) == rsqrt(max(||x||^2, eps^2))  (EUP slot).
    inv_nx = lax.rsqrt(jnp.maximum(jnp.sum(x * x, axis=-1, keepdims=True),
                                   EPS * EPS))

    x_bf = x.astype(jnp.bfloat16)

    # cosine(x, y) = (x / ||x||) @ y_s.T ; y_s_T is resident [512, c_pad] bf16.
    cos = jnp.dot(x_bf, yst_ref[...], preferred_element_type=jnp.float32)
    cos = cos * inv_nx                                          # [tm, c_pad] f32

    # linear_main on concat([x, cos]) == x @ Wm_x + cos @ Wm_c + bm  (bf16 in, f32 acc)
    logits = (jnp.dot(x_bf, wmx_ref[...], preferred_element_type=jnp.float32)
              + jnp.dot(cos.astype(jnp.bfloat16), wmc_ref[...],
                        preferred_element_type=jnp.float32)
              + bm_ref[...])                                    # [tm, c_pad]

    # LogSoftmax(dim=1); padded classes carry -inf bias -> exp() contributes 0.
    m = jnp.max(logits, axis=-1, keepdims=True)
    shifted = logits - m
    lse = jnp.log(jnp.sum(jnp.exp(shifted), axis=-1, keepdims=True))
    out_ref[...] = (shifted - lse).astype(out_ref.dtype)


def prepare_params(w1, b1, w2, b2, wm, bm, num_classes):
    """One-time parameter prep (transpose / pad / bf16 cast). Call at param-load time."""
    c_pad = _round_up(max(num_classes, 1), LANE)
    w1_t = jnp.asarray(w1, jnp.float32).T.astype(jnp.bfloat16)        # [768, 512]
    w2_t = jnp.asarray(w2, jnp.float32).T.astype(jnp.bfloat16)        # [768, 512]
    b1_2d = jnp.asarray(b1, jnp.float32).reshape(1, FF)
    b2_2d = jnp.asarray(b2, jnp.float32).reshape(1, FF)
    wm = jnp.asarray(wm, jnp.float32)
    # Split final weight so the kernel never materializes the concat; zero-pad
    # extra class rows/cols so padded cosine columns cannot contaminate logits.
    wm_x = (jnp.zeros((FF, c_pad), jnp.float32)
            .at[:, :num_classes].set(wm[:, :FF].T).astype(jnp.bfloat16))
    wm_c = (jnp.zeros((c_pad, c_pad), jnp.float32)
            .at[:num_classes, :num_classes].set(wm[:, FF:].T).astype(jnp.bfloat16))
    # -inf bias on padded classes -> exp(logit) == 0 -> log-softmax over the
    # padded lane group equals log-softmax over the real classes.
    bm_pad = jnp.full((1, c_pad), -jnp.inf, jnp.float32).at[0, :num_classes].set(
        jnp.asarray(bm, jnp.float32))
    return (w1_t, b1_2d, w2_t, b2_2d, wm_x, wm_c, bm_pad)


def _choose_tm(bs):
    """Batch tile: <=512 rows, multiple of 16 (bf16 sublanes), padding < 1 tile,
    and >=2 grid steps for bs >= 32 so both v7x TensorCores are fed."""
    cap = 512
    n_steps = _cdiv(max(bs, 1), cap)
    if bs >= 32:
        n_steps = max(n_steps, 2)
    return _round_up(_cdiv(max(bs, 1), n_steps), 16)


@jax.jit
def withaim_classifier_forward(last_hidden, inputs_aims,
                               w1_t, b1, w2_t, b2, wm_x, wm_c, bm):
    """last_hidden: [bs, 768]; inputs_aims: [C, 768]; params from prepare_params()."""
    bs, hidden = last_hidden.shape
    num_classes = inputs_aims.shape[0]
    c_pad = wm_x.shape[1]

    # ---- Batch-independent aims branch, hoisted out of the kernel (once per call).
    y = jnp.dot(inputs_aims.astype(jnp.bfloat16), w2_t,
                preferred_element_type=jnp.float32) + b2
    y = jnp.maximum(y, 0.0)                                          # [C, 512] f32
    inv_ny = lax.rsqrt(jnp.maximum(jnp.sum(y * y, axis=-1, keepdims=True),
                                   EPS * EPS))
    y_s = (y * inv_ny).astype(jnp.bfloat16)                          # [C, 512]
    # Pre-transposed, class-padded (zero cols) resident operand: [512, c_pad] bf16.
    y_s_t = jnp.zeros((FF, c_pad), jnp.bfloat16).at[:, :num_classes].set(y_s.T)

    # ---- Batch tiling.
    tm = _choose_tm(bs)
    bs_pad = _round_up(bs, tm)

    h = last_hidden.astype(jnp.bfloat16)
    if bs_pad != bs:
        h = jnp.pad(h, ((0, bs_pad - bs), (0, 0)))                   # [bs_pad, 768]

    def resident(shape):
        return pl.BlockSpec(shape, lambda i: (0,) * len(shape))

    out = pl.pallas_call(
        _withaim_kernel,
        out_shape=jax.ShapeDtypeStruct((bs_pad, c_pad), jnp.float32),
        grid_spec=pltpu.PrefetchScalarGridSpec(
            num_scalar_prefetch=0,
            grid=(bs_pad // tm,),
            in_specs=[
                # NOTE: if profiling shows exposed h-tile DMA on v6e, add
                # pipeline_mode=pl.Buffered(3) to this spec.
                pl.BlockSpec((tm, hidden), lambda i: (i, 0)),   # h tile (streamed)
                resident((hidden, FF)),                         # W1t  bf16
                resident((1, FF)),                              # b1   f32
                resident((FF, c_pad)),                          # y_s_T bf16
                resident((FF, c_pad)),                          # Wm_x bf16
                resident((c_pad, c_pad)),                       # Wm_c bf16
                resident((1, c_pad)),                           # bm (-inf padded) f32
            ],
            out_specs=pl.BlockSpec((tm, c_pad), lambda i: (i, 0)),
        ),
        compiler_params=pltpu.CompilerParams(
            dimension_semantics=("parallel",)),
    )(h, w1_t, b1, y_s_t, wm_x, wm_c, bm)

    return out[:bs, :num_classes]


def _reference_f32(last_hidden, inputs_aims, w1, b1, w2, b2, wm, bm):
    """Pure-JAX f32 reference mirroring the PyTorch forward (eval mode)."""
    x = jnp.maximum(last_hidden @ w1.T + b1, 0.0)
    y = jnp.maximum(inputs_aims @ w2.T + b2, 0.0)
    x_n = jnp.linalg.norm(x, axis=1, keepdims=True)
    y_n = jnp.linalg.norm(y, axis=1, keepdims=True)
    cos = (x / jnp.maximum(x_n, EPS)) @ (y / jnp.maximum(y_n, EPS)).T
    logits = jnp.concatenate([x, cos], axis=1) @ wm.T + bm
    return jax.nn.log_softmax(logits, axis=1)


def _reference_bf16_matched(last_hidden, inputs_aims, w1, b1, w2, b2, wm, bm):
    """Reference mirroring the kernel's bf16-input / f32-accumulate matmuls."""
    bf = jnp.bfloat16
    x = jnp.maximum(jnp.dot(last_hidden.astype(bf), w1.T.astype(bf),
                            preferred_element_type=jnp.float32) + b1, 0.0)
    y = jnp.maximum(jnp.dot(inputs_aims.astype(bf), w2.T.astype(bf),
                            preferred_element_type=jnp.float32) + b2, 0.0)
    inv_nx = lax.rsqrt(jnp.maximum(jnp.sum(x * x, -1, keepdims=True), EPS * EPS))
    inv_ny = lax.rsqrt(jnp.maximum(jnp.sum(y * y, -1, keepdims=True), EPS * EPS))
    y_s = (y * inv_ny).astype(bf)
    x_bf = x.astype(bf)
    cos = jnp.dot(x_bf, y_s.T, preferred_element_type=jnp.float32) * inv_nx
    logits = (jnp.dot(x_bf, wm[:, :FF].T.astype(bf),
                      preferred_element_type=jnp.float32)
              + jnp.dot(cos.astype(bf), wm[:, FF:].T.astype(bf),
                        preferred_element_type=jnp.float32)
              + bm)
    return jax.nn.log_softmax(logits, axis=1)


if __name__ == "__main__":
    key = jax.random.PRNGKey(0)
    bs, hidden, num_classes = 8, HIDDEN, 8

    keys = jax.random.split(key, 10)
    last_hidden = jax.random.normal(keys[0], (bs, hidden), jnp.float32)
    inputs_aims = jax.random.normal(keys[1], (num_classes, hidden), jnp.float32)

    # Deterministic parameter init (uniform, nn.Linear-style bounds).
    def lin_init(kw, kb, out_f, in_f):
        bound = 1.0 / jnp.sqrt(in_f)
        w = jax.random.uniform(kw, (out_f, in_f), jnp.float32, -bound, bound)
        b = jax.random.uniform(kb, (out_f,), jnp.float32, -bound, bound)
        return w, b

    w1, b1 = lin_init(keys[2], keys[3], FF, hidden)                       # linear1_1
    w2, b2 = lin_init(keys[4], keys[5], FF, hidden)                       # linear2_1
    wm, bm = lin_init(keys[6], keys[7], num_classes, FF + num_classes)    # linear_main_1

    # One-time weight prep (transposes / padding / bf16 cast) -- NOT per call.
    params = prepare_params(w1, b1, w2, b2, wm, bm, num_classes)

    out = withaim_classifier_forward(last_hidden, inputs_aims, *params)
    out = jax.block_until_ready(out)

    assert out.shape == (bs, num_classes)
    assert bool(jnp.isfinite(out).all()), "non-finite output"

    # Tight check vs a reference that mirrors the kernel's bf16 matmul inputs.
    ref_bf16 = _reference_bf16_matched(last_hidden, inputs_aims,
                                       w1, b1, w2, b2, wm, bm)
    assert jnp.allclose(out, ref_bf16, atol=1e-2, rtol=1e-2), \
        "mismatch vs bf16-matched reference"

    # Loose sanity check vs the full-f32 PyTorch-semantics reference
    # (difference comes only from bf16 rounding of matmul inputs).
    ref_f32 = _reference_f32(last_hidden, inputs_aims, w1, b1, w2, b2, wm, bm)
    assert jnp.allclose(out, ref_f32, atol=5e-2, rtol=5e-2), \
        "mismatch vs f32 reference"

    print("KERNEL_OK")
</pallas_src>

<mosaic_0001>
module attributes {stable_mosaic.version = 11 : i64} {
  func.func @_withaim_kernel(%arg0: i32, %arg1: memref<16x768xbf16, #tpu.memory_space<vmem>>, %arg2: memref<768x512xbf16, #tpu.memory_space<vmem>>, %arg3: memref<1x512xf32, #tpu.memory_space<vmem>>, %arg4: memref<512x128xbf16, #tpu.memory_space<vmem>>, %arg5: memref<512x128xbf16, #tpu.memory_space<vmem>>, %arg6: memref<128x128xbf16, #tpu.memory_space<vmem>>, %arg7: memref<1x128xf32, #tpu.memory_space<vmem>>, %arg8: memref<16x128xf32, #tpu.memory_space<vmem>>) attributes {dimension_semantics = [#tpu.dimension_semantics<parallel>], iteration_bounds = array<i64: 1>, scalar_prefetch = 0 : i64, scratch_operands = 0 : i64, tpu.core_type = #tpu.core_type<tc>, window_params = [{transform_indices = @transform_0, window_bounds = array<i64: 16, 768>}, {pipeline_mode = #tpu.pipeline_mode<synchronous>, transform_indices = @transform_1, window_bounds = array<i64: 768, 512>}, {pipeline_mode = #tpu.pipeline_mode<synchronous>, transform_indices = @transform_2, window_bounds = array<i64: 1, 512>}, {pipeline_mode = #tpu.pipeline_mode<synchronous>, transform_indices = @transform_3, window_bounds = array<i64: 512, 128>}, {pipeline_mode = #tpu.pipeline_mode<synchronous>, transform_indices = @transform_4, window_bounds = array<i64: 512, 128>}, {pipeline_mode = #tpu.pipeline_mode<synchronous>, transform_indices = @transform_5, window_bounds = array<i64: 128, 128>}, {pipeline_mode = #tpu.pipeline_mode<synchronous>, transform_indices = @transform_6, window_bounds = array<i64: 1, 128>}, {transform_indices = @transform_7, window_bounds = array<i64: 16, 128>}]} {
    %c0 = arith.constant 0 : index
    %c0_0 = arith.constant 0 : index
    %0 = vector.load %arg1[%c0, %c0_0] : memref<16x768xbf16, #tpu.memory_space<vmem>>, vector<16x768xbf16>
    %c0_1 = arith.constant 0 : index
    %c0_2 = arith.constant 0 : index
    %1 = vector.load %arg2[%c0_1, %c0_2] : memref<768x512xbf16, #tpu.memory_space<vmem>>, vector<768x512xbf16>
    %cst = arith.constant dense<0.000000e+00> : vector<16x512xf32>
    %2 = tpu.matmul %0, %1, %cst {dimension_numbers = #tpu.dot_dimension_numbers<[1], [0], [0], [1], [0, 0, 1, 1], [], []>} : vector<16x768xbf16>, vector<768x512xbf16>, vector<16x512xf32> -> vector<16x512xf32>
    %c0_3 = arith.constant 0 : index
    %c0_4 = arith.constant 0 : index
    %3 = vector.load %arg3[%c0_3, %c0_4] : memref<1x512xf32, #tpu.memory_space<vmem>>, vector<1x512xf32>
    %4 = vector.broadcast %3 : vector<1x512xf32> to vector<16x512xf32>
    %5 = arith.addf %2, %4 : vector<16x512xf32>
    %cst_5 = arith.constant 0.000000e+00 : f32
    %6 = vector.broadcast %cst_5 : f32 to vector<16x512xf32>
    %7 = arith.maximumf %5, %6 : vector<16x512xf32>
    %8 = arith.mulf %7, %7 : vector<16x512xf32>
    %cst_6 = arith.constant dense<0.000000e+00> : vector<16xf32>
    %9 = vector.multi_reduction <add>, %8, %cst_6 [1] : vector<16x512xf32> to vector<16xf32>
    %10 = vector.shape_cast %9 : vector<16xf32> to vector<16x1xf32>
    %cst_7 = arith.constant 1.000000e-16 : f32
    %11 = vector.broadcast %cst_7 : f32 to vector<16x1xf32>
    %12 = arith.maximumf %10, %11 : vector<16x1xf32>
    %13 = math.rsqrt %12 : vector<16x1xf32>
    %14 = arith.truncf %7 : vector<16x512xf32> to vector<16x512xbf16>
    %c0_8 = arith.constant 0 : index
    %c0_9 = arith.constant 0 : index
    %15 = vector.load %arg4[%c0_8, %c0_9] : memref<512x128xbf16, #tpu.memory_space<vmem>>, vector<512x128xbf16>
    %cst_10 = arith.constant dense<0.000000e+00> : vector<16x128xf32>
    %16 = tpu.matmul %14, %15, %cst_10 {dimension_numbers = #tpu.dot_dimension_numbers<[1], [0], [0], [1], [0, 0, 1, 1], [], []>} : vector<16x512xbf16>, vector<512x128xbf16>, vector<16x128xf32> -> vector<16x128xf32>
    %17 = vector.broadcast %13 : vector<16x1xf32> to vector<16x128xf32>
    %18 = arith.mulf %16, %17 : vector<16x128xf32>
    %c0_11 = arith.constant 0 : index
    %c0_12 = arith.constant 0 : index
    %19 = vector.load %arg5[%c0_11, %c0_12] : memref<512x128xbf16, #tpu.memory_space<vmem>>, vector<512x128xbf16>
    %cst_13 = arith.constant dense<0.000000e+00> : vector<16x128xf32>
    %20 = tpu.matmul %14, %19, %cst_13 {dimension_numbers = #tpu.dot_dimension_numbers<[1], [0], [0], [1], [0, 0, 1, 1], [], []>} : vector<16x512xbf16>, vector<512x128xbf16>, vector<16x128xf32> -> vector<16x128xf32>
    %21 = arith.truncf %18 : vector<16x128xf32> to vector<16x128xbf16>
    %c0_14 = arith.constant 0 : index
    %c0_15 = arith.constant 0 : index
    %22 = vector.load %arg6[%c0_14, %c0_15] : memref<128x128xbf16, #tpu.memory_space<vmem>>, vector<128x128xbf16>
    %cst_16 = arith.constant dense<0.000000e+00> : vector<16x128xf32>
    %23 = tpu.matmul %21, %22, %cst_16 {dimension_numbers = #tpu.dot_dimension_numbers<[1], [0], [0], [1], [0, 0, 1, 1], [], []>} : vector<16x128xbf16>, vector<128x128xbf16>, vector<16x128xf32> -> vector<16x128xf32>
    %24 = arith.addf %20, %23 : vector<16x128xf32>
    %c0_17 = arith.constant 0 : index
    %c0_18 = arith.constant 0 : index
    %25 = vector.load %arg7[%c0_17, %c0_18] : memref<1x128xf32, #tpu.memory_space<vmem>>, vector<1x128xf32>
    %26 = vector.broadcast %25 : vector<1x128xf32> to vector<16x128xf32>
    %27 = arith.addf %24, %26 : vector<16x128xf32>
    %cst_19 = arith.constant dense<0xFF800000> : vector<16xf32>
    %28 = vector.multi_reduction <maximumf>, %27, %cst_19 [1] : vector<16x128xf32> to vector<16xf32>
    %29 = vector.shape_cast %28 : vector<16xf32> to vector<16x1xf32>
    %30 = vector.broadcast %29 : vector<16x1xf32> to vector<16x128xf32>
    %31 = arith.subf %27, %30 : vector<16x128xf32>
    %32 = math.exp %31 : vector<16x128xf32>
    %cst_20 = arith.constant dense<0.000000e+00> : vector<16xf32>
    %33 = vector.multi_reduction <add>, %32, %cst_20 [1] : vector<16x128xf32> to vector<16xf32>
    %34 = vector.shape_cast %33 : vector<16xf32> to vector<16x1xf32>
    %35 = math.log %34 : vector<16x1xf32>
    %36 = vector.broadcast %35 : vector<16x1xf32> to vector<16x128xf32>
    %37 = arith.subf %31, %36 : vector<16x128xf32>
    %c0_21 = arith.constant 0 : index
    %c0_22 = arith.constant 0 : index
    %38 = vector.load %arg8[%c0_21, %c0_22] : memref<16x128xf32, #tpu.memory_space<vmem>>, vector<16x128xf32>
    tpu.vector_store %arg8[%c0_21, %c0_22], %37 {strides = array<i32>} : memref<16x128xf32, #tpu.memory_space<vmem>>, vector<16x128xf32>,
    return
  }
  func.func @transform_0(%arg0: i32) -> (i32, i32) {
    %c0_i32 = arith.constant 0 : i32
    %c0_i32_0 = arith.constant 0 : i32
    return %arg0, %c0_i32 : i32, i32
  }
  func.func @transform_1(%arg0: i32) -> (i32, i32) {
    %c0_i32 = arith.constant 0 : i32
    %c0_i32_0 = arith.constant 0 : i32
    %c0_i32_1 = arith.constant 0 : i32
    return %c0_i32, %c0_i32_0 : i32, i32
  }
  func.func @transform_2(%arg0: i32) -> (i32, i32) {
    %c0_i32 = arith.constant 0 : i32
    %c0_i32_0 = arith.constant 0 : i32
    %c0_i32_1 = arith.constant 0 : i32
    return %c0_i32, %c0_i32_0 : i32, i32
  }
  func.func @transform_3(%arg0: i32) -> (i32, i32) {
    %c0_i32 = arith.constant 0 : i32
    %c0_i32_0 = arith.constant 0 : i32
    %c0_i32_1 = arith.constant 0 : i32
    return %c0_i32, %c0_i32_0 : i32, i32
  }
  func.func @transform_4(%arg0: i32) -> (i32, i32) {
    %c0_i32 = arith.constant 0 : i32
    %c0_i32_0 = arith.constant 0 : i32
    %c0_i32_1 = arith.constant 0 : i32
    return %c0_i32, %c0_i32_0 : i32, i32
  }
  func.func @transform_5(%arg0: i32) -> (i32, i32) {
    %c0_i32 = arith.constant 0 : i32
    %c0_i32_0 = arith.constant 0 : i32
    %c0_i32_1 = arith.constant 0 : i32
    return %c0_i32, %c0_i32_0 : i32, i32
  }
  func.func @transform_6(%arg0: i32) -> (i32, i32) {
    %c0_i32 = arith.constant 0 : i32
    %c0_i32_0 = arith.constant 0 : i32
    %c0_i32_1 = arith.constant 0 : i32
    return %c0_i32, %c0_i32_0 : i32, i32
  }
  func.func @transform_7(%arg0: i32) -> (i32, i32) {
    %c0_i32 = arith.constant 0 : i32
    %c0_i32_0 = arith.constant 0 : i32
    return %arg0, %c0_i32 : i32, i32
  }
}

</mosaic_0001>

<llo_original>
// kernel: withaim_classifier_forward.1
$region0: #{withaim_classifier_forward.1}
  #allocation0 [shape = 'u32[]', space=smem, size = 0x4, offset = 0x4, fixed_abs, tag = 'smem constant byte address 0x4 - core index']
  #allocation1 [shape = 'u32[144,128]{1,0:T(1,128)}', space=vmem, size = 0x12000, scoped, tag = 'internal scratch']
  %s0 = inlined_call_operand.vmem [shape: bf16[16,768], index: 0, kind: input, shape index: {}]
  %s1 = inlined_call_operand.vmem [shape: bf16[768,512], index: 1, kind: input, shape index: {}]
  %s2 = inlined_call_operand.vmem [shape: f32[1,512], index: 2, kind: input, shape index: {}]
  %s3 = inlined_call_operand.vmem [shape: bf16[512,128], index: 3, kind: input, shape index: {}]
  %s4 = inlined_call_operand.vmem [shape: bf16[512,128], index: 4, kind: input, shape index: {}]
  %s5 = inlined_call_operand.vmem [shape: bf16[128,128], index: 5, kind: input, shape index: {}]
  %s6 = inlined_call_operand.vmem [shape: f32[1,128], index: 6, kind: input, shape index: {}]
  %s7 = inlined_call_operand.vmem [shape: f32[16,128], index: 7, kind: output, shape index: {}]
  %s8 = sld [smem:[#allocation0]]
  $region38: #{withaim_classifier_forward.1} parent=0
    _
  %s10 = ssub.s32 1, %s8
  %s11 = scalar_select 0, %s10, %s8
  // Predicated region
  $region2: #{withaim_classifier_forward.1} parent=0 // pred_check
    _
  $region3: #{withaim_classifier_forward.1} parent=0 // pred_check_branch
    %13 = sbr.rel (0) target = $region5
  $region4: #{withaim_classifier_forward.1} parent=0 // pred_region
    _
  $region5: #{withaim_classifier_forward.1} parent=0 // pred_fallthru
    _
  // Predicated region
  $region6: #{withaim_classifier_forward.1} parent=0 // pred_check
    _
  $region7: #{withaim_classifier_forward.1} parent=0 // pred_check_branch
    %15 = sbr.rel (0) target = $region9
  $region8: #{withaim_classifier_forward.1} parent=0 // pred_region
    _
  $region9: #{withaim_classifier_forward.1} parent=0 // pred_fallthru
    _
  // Predicated region
  $region10: #{withaim_classifier_forward.1} parent=0 // pred_check
    _
  $region11: #{withaim_classifier_forward.1} parent=0 // pred_check_branch
    %17 = sbr.rel (0) target = $region13
  $region12: #{withaim_classifier_forward.1} parent=0 // pred_region
    _
  $region13: #{withaim_classifier_forward.1} parent=0 // pred_fallthru
    _
  // Predicated region
  $region14: #{withaim_classifier_forward.1} parent=0 // pred_check
    _
  $region15: #{withaim_classifier_forward.1} parent=0 // pred_check_branch
    %19 = sbr.rel (0) target = $region17
  $region16: #{withaim_classifier_forward.1} parent=0 // pred_region
    _
  $region17: #{withaim_classifier_forward.1} parent=0 // pred_fallthru
    _
  // Predicated region
  $region18: #{withaim_classifier_forward.1} parent=0 // pred_check
    _
  $region19: #{withaim_classifier_forward.1} parent=0 // pred_check_branch
    %21 = sbr.rel (0) target = $region21
  $region20: #{withaim_classifier_forward.1} parent=0 // pred_region
    _
  $region21: #{withaim_classifier_forward.1} parent=0 // pred_fallthru
    _
  // Predicated region
  $region22: #{withaim_classifier_forward.1} parent=0 // pred_check
    _
  $region23: #{withaim_classifier_forward.1} parent=0 // pred_check_branch
    %23 = sbr.rel (0) target = $region25
  $region24: #{withaim_classifier_forward.1} parent=0 // pred_region
    _
  $region25: #{withaim_classifier_forward.1} parent=0 // pred_fallthru
    _
  // Predicated region
  $region26: #{withaim_classifier_forward.1} parent=0 // pred_check
    _
  $region27: #{withaim_classifier_forward.1} parent=0 // pred_check_branch
    %25 = sbr.rel (0) target = $region29
  $region28: #{withaim_classifier_forward.1} parent=0 // pred_region
    _
  $region29: #{withaim_classifier_forward.1} parent=0 // pred_fallthru
    _
  %v27 = vld [vmem:[%s0] sm:$0xff]
  %v28 = vld [vmem:[%s0 + $0x8] sm:$0xff]
  %v29 = vld [vmem:[%s0 + $0x10] sm:$0xff]
  %v30 = vld [vmem:[%s0 + $0x18] sm:$0xff]
  %v31 = vld [vmem:[%s0 + $0x20] sm:$0xff]
  %v32 = vld [vmem:[%s0 + $0x28] sm:$0xff]
  %v33 = vld [vmem:[%s1] sm:$0xff]
  %v34 = vld [vmem:[%s1 + $0x8] sm:$0xff]
  %v35 = vld [vmem:[%s1 + $0x10] sm:$0xff]
  %v36 = vld [vmem:[%s1 + $0x18] sm:$0xff]
  %v37 = vld [vmem:[%s1 + $0x20] sm:$0xff]
  %v38 = vld [vmem:[%s1 + $0x28] sm:$0xff]
  %v39 = vld [vmem:[%s1 + $0x30] sm:$0xff]
  %v40 = vld [vmem:[%s1 + $0x38] sm:$0xff]
  %v41 = vld [vmem:[%s1 + $0x40] sm:$0xff]
  %v42 = vld [vmem:[%s1 + $0x48] sm:$0xff]
  %v43 = vld [vmem:[%s1 + $0x50] sm:$0xff]
  %v44 = vld [vmem:[%s1 + $0x58] sm:$0xff]
  %v45 = vld [vmem:[%s1 + $0x60] sm:$0xff]
  %v46 = vld [vmem:[%s1 + $0x68] sm:$0xff]
  %v47 = vld [vmem:[%s1 + $0x70] sm:$0xff]
  %v48 = vld [vmem:[%s1 + $0x78] sm:$0xff]
  %v49 = vld [vmem:[%s1 + $0x80] sm:$0xff]
  %v50 = vld [vmem:[%s1 + $0x88] sm:$0xff]
  %v51 = vld [vmem:[%s1 + $0x90] sm:$0xff]
  %v52 = vld [vmem:[%s1 + $0x98] sm:$0xff]
  %v53 = vld [vmem:[%s1 + $0xa0] sm:$0xff]
  %v54 = vld [vmem:[%s1 + $0xa8] sm:$0xff]
  %v55 = vld [vmem:[%s1 + $0xb0] sm:$0xff]
  %v56 = vld [vmem:[%s1 + $0xb8] sm:$0xff]
  %v57 = vld [vmem:[%s1 + $0xc0] sm:$0xff]
  %v58 = vld [vmem:[%s1 + $0xc8] sm:$0xff]
  %v59 = vld [vmem:[%s1 + $0xd0] sm:$0xff]
  %v60 = vld [vmem:[%s1 + $0xd8] sm:$0xff]
  %v61 = vld [vmem:[%s1 + $0xe0] sm:$0xff]
  %v62 = vld [vmem:[%s1 + $0xe8] sm:$0xff]
  %v63 = vld [vmem:[%s1 + $0xf0] sm:$0xff]
  %v64 = vld [vmem:[%s1 + $0xf8] sm:$0xff]
  %v65 = vld [vmem:[%s1 + $0x100] sm:$0xff]
  %v66 = vld [vmem:[%s1 + $0x108] sm:$0xff]
  %v67 = vld [vmem:[%s1 + $0x110] sm:$0xff]
  %v68 = vld [vmem:[%s1 + $0x118] sm:$0xff]
  %v69 = vld [vmem:[%s1 + $0x120] sm:$0xff]
  %v70 = vld [vmem:[%s1 + $0x128] sm:$0xff]
  %v71 = vld [vmem:[%s1 + $0x130] sm:$0xff]
  %v72 = vld [vmem:[%s1 + $0x138] sm:$0xff]
  %v73 = vld [vmem:[%s1 + $0x140] sm:$0xff]
  %v74 = vld [vmem:[%s1 + $0x148] sm:$0xff]
  %v75 = vld [vmem:[%s1 + $0x150] sm:$0xff]
  %v76 = vld [vmem:[%s1 + $0x158] sm:$0xff]
  %v77 = vld [vmem:[%s1 + $0x160] sm:$0xff]
  %v78 = vld [vmem:[%s1 + $0x168] sm:$0xff]
  %v79 = vld [vmem:[%s1 + $0x170] sm:$0xff]
  %v80 = vld [vmem:[%s1 + $0x178] sm:$0xff]
  %v81 = vld [vmem:[%s1 + $0x180] sm:$0xff]
  %v82 = vld [vmem:[%s1 + $0x188] sm:$0xff]
  %v83 = vld [vmem:[%s1 + $0x190] sm:$0xff]
  %v84 = vld [vmem:[%s1 + $0x198] sm:$0xff]
  %v85 = vld [vmem:[%s1 + $0x1a0] sm:$0xff]
  %v86 = vld [vmem:[%s1 + $0x1a8] sm:$0xff]
  %v87 = vld [vmem:[%s1 + $0x1b0] sm:$0xff]
  %v88 = vld [vmem:[%s1 + $0x1b8] sm:$0xff]
  %v89 = vld [vmem:[%s1 + $0x1c0] sm:$0xff]
  %v90 = vld [vmem:[%s1 + $0x1c8] sm:$0xff]
  %v91 = vld [vmem:[%s1 + $0x1d0] sm:$0xff]
  %v92 = vld [vmem:[%s1 + $0x1d8] sm:$0xff]
  %v93 = vld [vmem:[%s1 + $0x1e0] sm:$0xff]
  %v94 = vld [vmem:[%s1 + $0x1e8] sm:$0xff]
  %v95 = vld [vmem:[%s1 + $0x1f0] sm:$0xff]
  %v96 = vld [vmem:[%s1 + $0x1f8] sm:$0xff]
  %v97 = vld [vmem:[%s1 + $0x200] sm:$0xff]
  %v98 = vld [vmem:[%s1 + $0x208] sm:$0xff]
  %v99 = vld [vmem:[%s1 + $0x210] sm:$0xff]
  %v100 = vld [vmem:[%s1 + $0x218] sm:$0xff]
  %v101 = vld [vmem:[%s1 + $0x220] sm:$0xff]
  %v102 = vld [vmem:[%s1 + $0x228] sm:$0xff]
  %v103 = vld [vmem:[%s1 + $0x230] sm:$0xff]
  %v104 = vld [vmem:[%s1 + $0x238] sm:$0xff]
  %v105 = vld [vmem:[%s1 + $0x240] sm:$0xff]
  %v106 = vld [vmem:[%s1 + $0x248] sm:$0xff]
  %v107 = vld [vmem:[%s1 + $0x250] sm:$0xff]
  %v108 = vld [vmem:[%s1 + $0x258] sm:$0xff]
  %v109 = vld [vmem:[%s1 + $0x260] sm:$0xff]
  %v110 = vld [vmem:[%s1 + $0x268] sm:$0xff]
  %v111 = vld [vmem:[%s1 + $0x270] sm:$0xff]
  %v112 = vld [vmem:[%s1 + $0x278] sm:$0xff]
  %v113 = vld [vmem:[%s1 + $0x280] sm:$0xff]
  %v114 = vld [vmem:[%s1 + $0x288] sm:$0xff]
  %v115 = vld [vmem:[%s1 + $0x290] sm:$0xff]
  %v116 = vld [vmem:[%s1 + $0x298] sm:$0xff]
  %v117 = vld [vmem:[%s1 + $0x2a0] sm:$0xff]
  %v118 = vld [vmem:[%s1 + $0x2a8] sm:$0xff]
  %v119 = vld [vmem:[%s1 + $0x2b0] sm:$0xff]
  %v120 = vld [vmem:[%s1 + $0x2b8] sm:$0xff]
  %v121 = vld [vmem:[%s1 + $0x2c0] sm:$0xff]
  %v122 = vld [vmem:[%s1 + $0x2c8] sm:$0xff]
  %v123 = vld [vmem:[%s1 + $0x2d0] sm:$0xff]
  %v124 = vld [vmem:[%s1 + $0x2d8] sm:$0xff]
  %v125 = vld [vmem:[%s1 + $0x2e0] sm:$0xff]
  %v126 = vld [vmem:[%s1 + $0x2e8] sm:$0xff]
  %v127 = vld [vmem:[%s1 + $0x2f0] sm:$0xff]
  %v128 = vld [vmem:[%s1 + $0x2f8] sm:$0xff]
  %v129 = vld [vmem:[%s1 + $0x300] sm:$0xff]
  %v130 = vld [vmem:[%s1 + $0x308] sm:$0xff]
  %v131 = vld [vmem:[%s1 + $0x310] sm:$0xff]
  %v132 = vld [vmem:[%s1 + $0x318] sm:$0xff]
  %v133 = vld [vmem:[%s1 + $0x320] sm:$0xff]
  %v134 = vld [vmem:[%s1 + $0x328] sm:$0xff]
  %v135 = vld [vmem:[%s1 + $0x330] sm:$0xff]
  %v136 = vld [vmem:[%s1 + $0x338] sm:$0xff]
  %v137 = vld [vmem:[%s1 + $0x340] sm:$0xff]
  %v138 = vld [vmem:[%s1 + $0x348] sm:$0xff]
  %v139 = vld [vmem:[%s1 + $0x350] sm:$0xff]
  %v140 = vld [vmem:[%s1 + $0x358] sm:$0xff]
  %v141 = vld [vmem:[%s1 + $0x360] sm:$0xff]
  %v142 = vld [vmem:[%s1 + $0x368] sm:$0xff]
  %v143 = vld [vmem:[%s1 + $0x370] sm:$0xff]
  %v144 = vld [vmem:[%s1 + $0x378] sm:$0xff]
  %v145 = vld [vmem:[%s1 + $0x380] sm:$0xff]
  %v146 = vld [vmem:[%s1 + $0x388] sm:$0xff]
  %v147 = vld [vmem:[%s1 + $0x390] sm:$0xff]
  %v148 = vld [vmem:[%s1 + $0x398] sm:$0xff]
  %v149 = vld [vmem:[%s1 + $0x3a0] sm:$0xff]
  %v150 = vld [vmem:[%s1 + $0x3a8] sm:$0xff]
  %v151 = vld [vmem:[%s1 + $0x3b0] sm:$0xff]
  %v152 = vld [vmem:[%s1 + $0x3b8] sm:$0xff]
  %v153 = vld [vmem:[%s1 + $0x3c0] sm:$0xff]
  %v154 = vld [vmem:[%s1 + $0x3c8] sm:$0xff]
  %v155 = vld [vmem:[%s1 + $0x3d0] sm:$0xff]
  %v156 = vld [vmem:[%s1 + $0x3d8] sm:$0xff]
  %v157 = vld [vmem:[%s1 + $0x3e0] sm:$0xff]
  %v158 = vld [vmem:[%s1 + $0x3e8] sm:$0xff]
  %v159 = vld [vmem:[%s1 + $0x3f0] sm:$0xff]
  %v160 = vld [vmem:[%s1 + $0x3f8] sm:$0xff]
  %v161 = vld [vmem:[%s1 + $0x400] sm:$0xff]
  %v162 = vld [vmem:[%s1 + $0x408] sm:$0xff]
  %v163 = vld [vmem:[%s1 + $0x410] sm:$0xff]
  %v164 = vld [vmem:[%s1 + $0x418] sm:$0xff]
  %v165 = vld [vmem:[%s1 + $0x420] sm:$0xff]
  %v166 = vld [vmem:[%s1 + $0x428] sm:$0xff]
  %v167 = vld [vmem:[%s1 + $0x430] sm:$0xff]
  %v168 = vld [vmem:[%s1 + $0x438] sm:$0xff]
  %v169 = vld [vmem:[%s1 + $0x440] sm:$0xff]
  %v170 = vld [vmem:[%s1 + $0x448] sm:$0xff]
  %v171 = vld [vmem:[%s1 + $0x450] sm:$0xff]
  %v172 = vld [vmem:[%s1 + $0x458] sm:$0xff]
  %v173 = vld [vmem:[%s1 + $0x460] sm:$0xff]
  %v174 = vld [vmem:[%s1 + $0x468] sm:$0xff]
  %v175 = vld [vmem:[%s1 + $0x470] sm:$0xff]
  %v176 = vld [vmem:[%s1 + $0x478] sm:$0xff]
  %v177 = vld [vmem:[%s1 + $0x480] sm:$0xff]
  %v178 = vld [vmem:[%s1 + $0x488] sm:$0xff]
  %v179 = vld [vmem:[%s1 + $0x490] sm:$0xff]
  %v180 = vld [vmem:[%s1 + $0x498] sm:$0xff]
  %v181 = vld [vmem:[%s1 + $0x4a0] sm:$0xff]
  %v182 = vld [vmem:[%s1 + $0x4a8] sm:$0xff]
  %v183 = vld [vmem:[%s1 + $0x4b0] sm:$0xff]
  %v184 = vld [vmem:[%s1 + $0x4b8] sm:$0xff]
  %v185 = vld [vmem:[%s1 + $0x4c0] sm:$0xff]
  %v186 = vld [vmem:[%s1 + $0x4c8] sm:$0xff]
  %v187 = vld [vmem:[%s1 + $0x4d0] sm:$0xff]
  %v188 = vld [vmem:[%s1 + $0x4d8] sm:$0xff]
  %v189 = vld [vmem:[%s1 + $0x4e0] sm:$0xff]
  %v190 = vld [vmem:[%s1 + $0x4e8] sm:$0xff]
  %v191 = vld [vmem:[%s1 + $0x4f0] sm:$0xff]
  %v192 = vld [vmem:[%s1 + $0x4f8] sm:$0xff]
  %v193 = vld [vmem:[%s1 + $0x500] sm:$0xff]
  %v194 = vld [vmem:[%s1 + $0x508] sm:$0xff]
  %v195 = vld [vmem:[%s1 + $0x510] sm:$0xff]
  %v196 = vld [vmem:[%s1 + $0x518] sm:$0xff]
  %v197 = vld [vmem:[%s1 + $0x520] sm:$0xff]
  %v198 = vld [vmem:[%s1 + $0x528] sm:$0xff]
  %v199 = vld [vmem:[%s1 + $0x530] sm:$0xff]
  %v200 = vld [vmem:[%s1 + $0x538] sm:$0xff]
  %v201 = vld [vmem:[%s1 + $0x540] sm:$0xff]
  %v202 = vld [vmem:[%s1 + $0x548] sm:$0xff]
  %v203 = vld [vmem:[%s1 + $0x550] sm:$0xff]
  %v204 = vld [vmem:[%s1 + $0x558] sm:$0xff]
  %v205 = vld [vmem:[%s1 + $0x560] sm:$0xff]
  %v206 = vld [vmem:[%s1 + $0x568] sm:$0xff]
  %v207 = vld [vmem:[%s1 + $0x570] sm:$0xff]
  %v208 = vld [vmem:[%s1 + $0x578] sm:$0xff]
  %v209 = vld [vmem:[%s1 + $0x580] sm:$0xff]
  %v210 = vld [vmem:[%s1 + $0x588] sm:$0xff]
  %v211 = vld [vmem:[%s1 + $0x590] sm:$0xff]
  %v212 = vld [vmem:[%s1 + $0x598] sm:$0xff]
  %v213 = vld [vmem:[%s1 + $0x5a0] sm:$0xff]
  %v214 = vld [vmem:[%s1 + $0x5a8] sm:$0xff]
  %v215 = vld [vmem:[%s1 + $0x5b0] sm:$0xff]
  %v216 = vld [vmem:[%s1 + $0x5b8] sm:$0xff]
  %v217 = vld [vmem:[%s1 + $0x5c0] sm:$0xff]
  %v218 = vld [vmem:[%s1 + $0x5c8] sm:$0xff]
  %v219 = vld [vmem:[%s1 + $0x5d0] sm:$0xff]
  %v220 = vld [vmem:[%s1 + $0x5d8] sm:$0xff]
  %v221 = vld [vmem:[%s1 + $0x5e0] sm:$0xff]
  %v222 = vld [vmem:[%s1 + $0x5e8] sm:$0xff]
  %v223 = vld [vmem:[%s1 + $0x5f0] sm:$0xff]
  %v224 = vld [vmem:[%s1 + $0x5f8] sm:$0xff]
  %v225 = vld [vmem:[%s2] sm:$0xf]
  %v227 = vlaneseq
  %v228 = vshrl.u32 %v227, 7
  %v229 = vsub.s32 0, %v228
  %v230 = vrot.slane %v225, %v229
  %v231 = vlaneseq
  %v232 = vshrl.u32 %v231, 7
  %v233 = vsub.s32 1, %v232
  %v234 = vrot.slane %v225, %v233
  %v235 = vlaneseq
  %v236 = vshrl.u32 %v235, 7
  %v237 = vsub.s32 2, %v236
  %v238 = vrot.slane %v225, %v237
  %v239 = vlaneseq
  %v240 = vshrl.u32 %v239, 7
  %v241 = vsub.s32 3, %v240
  %v242 = vrot.slane %v225, %v241
  %v253 = vunpack.c.l.b16 %v27
  %v254 = vunpack.c.h.b16 %v27
  %v255 = vunpack.c.l.b16 %v28
  %v256 = vunpack.c.h.b16 %v28
  %v257 = vunpack.c.l.b16 %v29
  %v258 = vunpack.c.h.b16 %v29
  %v259 = vunpack.c.l.b16 %v30
  %v260 = vunpack.c.h.b16 %v30
  %v261 = vunpack.c.l.b16 %v31
  %v262 = vunpack.c.h.b16 %v31
  %v263 = vunpack.c.l.b16 %v32
  %v264 = vunpack.c.h.b16 %v32
  %v265 = vpack.c.b16 %v259, %v253
  %v266 = vpack.c.b16 %v260, %v254
  %v267 = vpack.c.b16 %v261, %v255
  %v268 = vpack.c.b16 %v262, %v256
  %v269 = vpack.c.b16 %v263, %v257
  %v270 = vpack.c.b16 %v264, %v258
  %v469 = vunpack.c.l.b16 %v33
  %v470 = vunpack.c.h.b16 %v33
  %v471 = vunpack.c.l.b16 %v34
  %v472 = vunpack.c.h.b16 %v34
  %v473 = vunpack.c.l.b16 %v35
  %v474 = vunpack.c.h.b16 %v35
  %v475 = vunpack.c.l.b16 %v36
  %v476 = vunpack.c.h.b16 %v36
  %v477 = vunpack.c.l.b16 %v37
  %v478 = vunpack.c.h.b16 %v37
  %v479 = vunpack.c.l.b16 %v38
  %v480 = vunpack.c.h.b16 %v38
  %v481 = vunpack.c.l.b16 %v39
  %v482 = vunpack.c.h.b16 %v39
  %v483 = vunpack.c.l.b16 %v40
  %v484 = vunpack.c.h.b16 %v40
  %v485 = vunpack.c.l.b16 %v41
  %v486 = vunpack.c.h.b16 %v41
  %v487 = vunpack.c.l.b16 %v42
  %v488 = vunpack.c.h.b16 %v42
  %v489 = vunpack.c.l.b16 %v43
  %v490 = vunpack.c.h.b16 %v43
  %v491 = vunpack.c.l.b16 %v44
  %v492 = vunpack.c.h.b16 %v44
  %v493 = vunpack.c.l.b16 %v45
  %v494 = vunpack.c.h.b16 %v45
  %v495 = vunpack.c.l.b16 %v46
  %v496 = vunpack.c.h.b16 %v46
  %v497 = vunpack.c.l.b16 %v47
  %v498 = vunpack.c.h.b16 %v47
  %v499 = vunpack.c.l.b16 %v48
  %v500 = vunpack.c.h.b16 %v48
  %v501 = vunpack.c.l.b16 %v49
  %v502 = vunpack.c.h.b16 %v49
  %v503 = vunpack.c.l.b16 %v50
  %v504 = vunpack.c.h.b16 %v50
  %v505 = vunpack.c.l.b16 %v51
  %v506 = vunpack.c.h.b16 %v51
  %v507 = vunpack.c.l.b16 %v52
  %v508 = vunpack.c.h.b16 %v52
  %v509 = vunpack.c.l.b16 %v53
  %v510 = vunpack.c.h.b16 %v53
  %v511 = vunpack.c.l.b16 %v54
  %v512 = vunpack.c.h.b16 %v54
  %v513 = vunpack.c.l.b16 %v55
  %v514 = vunpack.c.h.b16 %v55
  %v515 = vunpack.c.l.b16 %v56
  %v516 = vunpack.c.h.b16 %v56
  %v517 = vunpack.c.l.b16 %v57
  %v518 = vunpack.c.h.b16 %v57
  %v519 = vunpack.c.l.b16 %v58
  %v520 = vunpack.c.h.b16 %v58
  %v521 = vunpack.c.l.b16 %v59
  %v522 = vunpack.c.h.b16 %v59
  %v523 = vunpack.c.l.b16 %v60
  %v524 = vunpack.c.h.b16 %v60
  %v525 = vunpack.c.l.b16 %v61
  %v526 = vunpack.c.h.b16 %v61
  %v527 = vunpack.c.l.b16 %v62
  %v528 = vunpack.c.h.b16 %v62
  %v529 = vunpack.c.l.b16 %v63
  %v530 = vunpack.c.h.b16 %v63
  %v531 = vunpack.c.l.b16 %v64
  %v532 = vunpack.c.h.b16 %v64
  %v533 = vunpack.c.l.b16 %v65
  %v534 = vunpack.c.h.b16 %v65
  %v535 = vunpack.c.l.b16 %v66
  %v536 = vunpack.c.h.b16 %v66
  %v537 = vunpack.c.l.b16 %v67
  %v538 = vunpack.c.h.b16 %v67
  %v539 = vunpack.c.l.b16 %v68
  %v540 = vunpack.c.h.b16 %v68
  %v541 = vunpack.c.l.b16 %v69
  %v542 = vunpack.c.h.b16 %v69
  %v543 = vunpack.c.l.b16 %v70
  %v544 = vunpack.c.h.b16 %v70
  %v545 = vunpack.c.l.b16 %v71
  %v546 = vunpack.c.h.b16 %v71
  %v547 = vunpack.c.l.b16 %v72
  %v548 = vunpack.c.h.b16 %v72
  %v549 = vunpack.c.l.b16 %v73
  %v550 = vunpack.c.h.b16 %v73
  %v551 = vunpack.c.l.b16 %v74
  %v552 = vunpack.c.h.b16 %v74
  %v553 = vunpack.c.l.b16 %v75
  %v554 = vunpack.c.h.b16 %v75
  %v555 = vunpack.c.l.b16 %v76
  %v556 = vunpack.c.h.b16 %v76
  %v557 = vunpack.c.l.b16 %v77
  %v558 = vunpack.c.h.b16 %v77
  %v559 = vunpack.c.l.b16 %v78
  %v560 = vunpack.c.h.b16 %v78
  %v561 = vunpack.c.l.b16 %v79
  %v562 = vunpack.c.h.b16 %v79
  %v563 = vunpack.c.l.b16 %v80
  %v564 = vunpack.c.h.b16 %v80
  %v565 = vunpack.c.l.b16 %v81
  %v566 = vunpack.c.h.b16 %v81
  %v567 = vunpack.c.l.b16 %v82
  %v568 = vunpack.c.h.b16 %v82
  %v569 = vunpack.c.l.b16 %v83
  %v570 = vunpack.c.h.b16 %v83
  %v571 = vunpack.c.l.b16 %v84
  %v572 = vunpack.c.h.b16 %v84
  %v573 = vunpack.c.l.b16 %v85
  %v574 = vunpack.c.h.b16 %v85
  %v575 = vunpack.c.l.b16 %v86
  %v576 = vunpack.c.h.b16 %v86
  %v577 = vunpack.c.l.b16 %v87
  %v578 = vunpack.c.h.b16 %v87
  %v579 = vunpack.c.l.b16 %v88
  %v580 = vunpack.c.h.b16 %v88
  %v581 = vunpack.c.l.b16 %v89
  %v582 = vunpack.c.h.b16 %v89
  %v583 = vunpack.c.l.b16 %v90
  %v584 = vunpack.c.h.b16 %v90
  %v585 = vunpack.c.l.b16 %v91
  %v586 = vunpack.c.h.b16 %v91
  %v587 = vunpack.c.l.b16 %v92
  %v588 = vunpack.c.h.b16 %v92
  %v589 = vunpack.c.l.b16 %v93
  %v590 = vunpack.c.h.b16 %v93
  %v591 = vunpack.c.l.b16 %v94
  %v592 = vunpack.c.h.b16 %v94
  %v593 = vunpack.c.l.b16 %v95
  %v594 = vunpack.c.h.b16 %v95
  %v595 = vunpack.c.l.b16 %v96
  %v596 = vunpack.c.h.b16 %v96
  %v597 = vunpack.c.l.b16 %v97
  %v598 = vunpack.c.h.b16 %v97
  %v599 = vunpack.c.l.b16 %v98
  %v600 = vunpack.c.h.b16 %v98
  %v601 = vunpack.c.l.b16 %v99
  %v602 = vunpack.c.h.b16 %v99
  %v603 = vunpack.c.l.b16 %v100
  %v604 = vunpack.c.h.b16 %v100
  %v605 = vunpack.c.l.b16 %v101
  %v606 = vunpack.c.h.b16 %v101
  %v607 = vunpack.c.l.b16 %v102
  %v608 = vunpack.c.h.b16 %v102
  %v609 = vunpack.c.l.b16 %v103
  %v610 = vunpack.c.h.b16 %v103
  %v611 = vunpack.c.l.b16 %v104
  %v612 = vunpack.c.h.b16 %v104
  %v613 = vunpack.c.l.b16 %v105
  %v614 = vunpack.c.h.b16 %v105
  %v615 = vunpack.c.l.b16 %v106
  %v616 = vunpack.c.h.b16 %v106
  %v617 = vunpack.c.l.b16 %v107
  %v618 = vunpack.c.h.b16 %v107
  %v619 = vunpack.c.l.b16 %v108
  %v620 = vunpack.c.h.b16 %v108
  %v621 = vunpack.c.l.b16 %v109
  %v622 = vunpack.c.h.b16 %v109
  %v623 = vunpack.c.l.b16 %v110
  %v624 = vunpack.c.h.b16 %v110
  %v625 = vunpack.c.l.b16 %v111
  %v626 = vunpack.c.h.b16 %v111
  %v627 = vunpack.c.l.b16 %v112
  %v628 = vunpack.c.h.b16 %v112
  %v629 = vunpack.c.l.b16 %v113
  %v630 = vunpack.c.h.b16 %v113
  %v631 = vunpack.c.l.b16 %v114
  %v632 = vunpack.c.h.b16 %v114
  %v633 = vunpack.c.l.b16 %v115
  %v634 = vunpack.c.h.b16 %v115
  %v635 = vunpack.c.l.b16 %v116
  %v636 = vunpack.c.h.b16 %v116
  %v637 = vunpack.c.l.b16 %v117
  %v638 = vunpack.c.h.b16 %v117
  %v639 = vunpack.c.l.b16 %v118
  %v640 = vunpack.c.h.b16 %v118
  %v641 = vunpack.c.l.b16 %v119
  %v642 = vunpack.c.h.b16 %v119
  %v643 = vunpack.c.l.b16 %v120
  %v644 = vunpack.c.h.b16 %v120
  %v645 = vunpack.c.l.b16 %v121
  %v646 = vunpack.c.h.b16 %v121
  %v647 = vunpack.c.l.b16 %v122
  %v648 = vunpack.c.h.b16 %v122
  %v649 = vunpack.c.l.b16 %v123
  %v650 = vunpack.c.h.b16 %v123
  %v651 = vunpack.c.l.b16 %v124
  %v652 = vunpack.c.h.b16 %v124
  %v653 = vunpack.c.l.b16 %v125
  %v654 = vunpack.c.h.b16 %v125
  %v655 = vunpack.c.l.b16 %v126
  %v656 = vunpack.c.h.b16 %v126
  %v657 = vunpack.c.l.b16 %v127
  %v658 = vunpack.c.h.b16 %v127
  %v659 = vunpack.c.l.b16 %v128
  %v660 = vunpack.c.h.b16 %v128
  %v661 = vunpack.c.l.b16 %v129
  %v662 = vunpack.c.h.b16 %v129
  %v663 = vunpack.c.l.b16 %v130
  %v664 = vunpack.c.h.b16 %v130
  %v665 = vunpack.c.l.b16 %v131
  %v666 = vunpack.c.h.b16 %v131
  %v667 = vunpack.c.l.b16 %v132
  %v668 = vunpack.c.h.b16 %v132
  %v669 = vunpack.c.l.b16 %v133
  %v670 = vunpack.c.h.b16 %v133
  %v671 = vunpack.c.l.b16 %v134
  %v672 = vunpack.c.h.b16 %v134
  %v673 = vunpack.c.l.b16 %v135
  %v674 = vunpack.c.h.b16 %v135
  %v675 = vunpack.c.l.b16 %v136
  %v676 = vunpack.c.h.b16 %v136
  %v677 = vunpack.c.l.b16 %v137
  %v678 = vunpack.c.h.b16 %v137
  %v679 = vunpack.c.l.b16 %v138
  %v680 = vunpack.c.h.b16 %v138
  %v681 = vunpack.c.l.b16 %v139
  %v682 = vunpack.c.h.b16 %v139
  %v683 = vunpack.c.l.b16 %v140
  %v684 = vunpack.c.h.b16 %v140
  %v685 = vunpack.c.l.b16 %v141
  %v686 = vunpack.c.h.b16 %v141
  %v687 = vunpack.c.l.b16 %v142
  %v688 = vunpack.c.h.b16 %v142
  %v689 = vunpack.c.l.b16 %v143
  %v690 = vunpack.c.h.b16 %v143
  %v691 = vunpack.c.l.b16 %v144
  %v692 = vunpack.c.h.b16 %v144
  %v693 = vunpack.c.l.b16 %v145
  %v694 = vunpack.c.h.b16 %v145
  %v695 = vunpack.c.l.b16 %v146
  %v696 = vunpack.c.h.b16 %v146
  %v697 = vunpack.c.l.b16 %v147
  %v698 = vunpack.c.h.b16 %v147
  %v699 = vunpack.c.l.b16 %v148
  %v700 = vunpack.c.h.b16 %v148
  %v701 = vunpack.c.l.b16 %v149
  %v702 = vunpack.c.h.b16 %v149
  %v703 = vunpack.c.l.b16 %v150
  %v704 = vunpack.c.h.b16 %v150
  %v705 = vunpack.c.l.b16 %v151
  %v706 = vunpack.c.h.b16 %v151
  %v707 = vunpack.c.l.b16 %v152
  %v708 = vunpack.c.h.b16 %v152
  %v709 = vunpack.c.l.b16 %v153
  %v710 = vunpack.c.h.b16 %v153
  %v711 = vunpack.c.l.b16 %v154
  %v712 = vunpack.c.h.b16 %v154
  %v713 = vunpack.c.l.b16 %v155
  %v714 = vunpack.c.h.b16 %v155
  %v715 = vunpack.c.l.b16 %v156
  %v716 = vunpack.c.h.b16 %v156
  %v717 = vunpack.c.l.b16 %v157
  %v718 = vunpack.c.h.b16 %v157
  %v719 = vunpack.c.l.b16 %v158
  %v720 = vunpack.c.h.b16 %v158
  %v721 = vunpack.c.l.b16 %v159
  %v722 = vunpack.c.h.b16 %v159
  %v723 = vunpack.c.l.b16 %v160
  %v724 = vunpack.c.h.b16 %v160
  %v725 = vunpack.c.l.b16 %v161
  %v726 = vunpack.c.h.b16 %v161
  %v727 = vunpack.c.l.b16 %v162
  %v728 = vunpack.c.h.b16 %v162
  %v729 = vunpack.c.l.b16 %v163
  %v730 = vunpack.c.h.b16 %v163
  %v731 = vunpack.c.l.b16 %v164
  %v732 = vunpack.c.h.b16 %v164
  %v733 = vunpack.c.l.b16 %v165
  %v734 = vunpack.c.h.b16 %v165
  %v735 = vunpack.c.l.b16 %v166
  %v736 = vunpack.c.h.b16 %v166
  %v737 = vunpack.c.l.b16 %v167
  %v738 = vunpack.c.h.b16 %v167
  %v739 = vunpack.c.l.b16 %v168
  %v740 = vunpack.c.h.b16 %v168
  %v741 = vunpack.c.l.b16 %v169
  %v742 = vunpack.c.h.b16 %v169
  %v743 = vunpack.c.l.b16 %v170
  %v744 = vunpack.c.h.b16 %v170
  %v745 = vunpack.c.l.b16 %v171
  %v746 = vunpack.c.h.b16 %v171
  %v747 = vunpack.c.l.b16 %v172
  %v748 = vunpack.c.h.b16 %v172
  %v749 = vunpack.c.l.b16 %v173
  %v750 = vunpack.c.h.b16 %v173
  %v751 = vunpack.c.l.b16 %v174
  %v752 = vunpack.c.h.b16 %v174
  %v753 = vunpack.c.l.b16 %v175
  %v754 = vunpack.c.h.b16 %v175
  %v755 = vunpack.c.l.b16 %v176
  %v756 = vunpack.c.h.b16 %v176
  %v757 = vunpack.c.l.b16 %v177
  %v758 = vunpack.c.h.b16 %v177
  %v759 = vunpack.c.l.b16 %v178
  %v760 = vunpack.c.h.b16 %v178
  %v761 = vunpack.c.l.b16 %v179
  %v762 = vunpack.c.h.b16 %v179
  %v763 = vunpack.c.l.b16 %v180
  %v764 = vunpack.c.h.b16 %v180
  %v765 = vunpack.c.l.b16 %v181
  %v766 = vunpack.c.h.b16 %v181
  %v767 = vunpack.c.l.b16 %v182
  %v768 = vunpack.c.h.b16 %v182
  %v769 = vunpack.c.l.b16 %v183
  %v770 = vunpack.c.h.b16 %v183
  %v771 = vunpack.c.l.b16 %v184
  %v772 = vunpack.c.h.b16 %v184
  %v773 = vunpack.c.l.b16 %v185
  %v774 = vunpack.c.h.b16 %v185
  %v775 = vunpack.c.l.b16 %v186
  %v776 = vunpack.c.h.b16 %v186
  %v777 = vunpack.c.l.b16 %v187
  %v778 = vunpack.c.h.b16 %v187
  %v779 = vunpack.c.l.b16 %v188
  %v780 = vunpack.c.h.b16 %v188
  %v781 = vunpack.c.l.b16 %v189
  %v782 = vunpack.c.h.b16 %v189
  %v783 = vunpack.c.l.b16 %v190
  %v784 = vunpack.c.h.b16 %v190
  %v785 = vunpack.c.l.b16 %v191
  %v786 = vunpack.c.h.b16 %v191
  %v787 = vunpack.c.l.b16 %v192
  %v788 = vunpack.c.h.b16 %v192
  %v789 = vunpack.c.l.b16 %v193
  %v790 = vunpack.c.h.b16 %v193
  %v791 = vunpack.c.l.b16 %v194
  %v792 = vunpack.c.h.b16 %v194
  %v793 = vunpack.c.l.b16 %v195
  %v794 = vunpack.c.h.b16 %v195
  %v795 = vunpack.c.l.b16 %v196
  %v796 = vunpack.c.h.b16 %v196
  %v797 = vunpack.c.l.b16 %v197
  %v798 = vunpack.c.h.b16 %v197
  %v799 = vunpack.c.l.b16 %v198
  %v800 = vunpack.c.h.b16 %v198
  %v801 = vunpack.c.l.b16 %v199
  %v802 = vunpack.c.h.b16 %v199
  %v803 = vunpack.c.l.b16 %v200
  %v804 = vunpack.c.h.b16 %v200
  %v805 = vunpack.c.l.b16 %v201
  %v806 = vunpack.c.h.b16 %v201
  %v807 = vunpack.c.l.b16 %v202
  %v808 = vunpack.c.h.b16 %v202
  %v809 = vunpack.c.l.b16 %v203
  %v810 = vunpack.c.h.b16 %v203
  %v811 = vunpack.c.l.b16 %v204
  %v812 = vunpack.c.h.b16 %v204
  %v813 = vunpack.c.l.b16 %v205
  %v814 = vunpack.c.h.b16 %v205
  %v815 = vunpack.c.l.b16 %v206
  %v816 = vunpack.c.h.b16 %v206
  %v817 = vunpack.c.l.b16 %v207
  %v818 = vunpack.c.h.b16 %v207
  %v819 = vunpack.c.l.b16 %v208
  %v820 = vunpack.c.h.b16 %v208
  %v821 = vunpack.c.l.b16 %v209
  %v822 = vunpack.c.h.b16 %v209
  %v823 = vunpack.c.l.b16 %v210
  %v824 = vunpack.c.h.b16 %v210
  %v825 = vunpack.c.l.b16 %v211
  %v826 = vunpack.c.h.b16 %v211
  %v827 = vunpack.c.l.b16 %v212
  %v828 = vunpack.c.h.b16 %v212
  %v829 = vunpack.c.l.b16 %v213
  %v830 = vunpack.c.h.b16 %v213
  %v831 = vunpack.c.l.b16 %v214
  %v832 = vunpack.c.h.b16 %v214
  %v833 = vunpack.c.l.b16 %v215
  %v834 = vunpack.c.h.b16 %v215
  %v835 = vunpack.c.l.b16 %v216
  %v836 = vunpack.c.h.b16 %v216
  %v837 = vunpack.c.l.b16 %v217
  %v838 = vunpack.c.h.b16 %v217
  %v839 = vunpack.c.l.b16 %v218
  %v840 = vunpack.c.h.b16 %v218
  %v841 = vunpack.c.l.b16 %v219
  %v842 = vunpack.c.h.b16 %v219
  %v843 = vunpack.c.l.b16 %v220
  %v844 = vunpack.c.h.b16 %v220
  %v845 = vunpack.c.l.b16 %v221
  %v846 = vunpack.c.h.b16 %v221
  %v847 = vunpack.c.l.b16 %v222
  %v848 = vunpack.c.h.b16 %v222
  %v849 = vunpack.c.l.b16 %v223
  %v850 = vunpack.c.h.b16 %v223
  %v851 = vunpack.c.l.b16 %v224
  %v852 = vunpack.c.h.b16 %v224
  %v853 = vpack.c.b16 %v473, %v469
  %v854 = vpack.c.b16 %v474, %v470
  %v855 = vpack.c.b16 %v475, %v471
  %v856 = vpack.c.b16 %v476, %v472
  %v857 = vpack.c.b16 %v481, %v477
  %v858 = vpack.c.b16 %v482, %v478
  %v859 = vpack.c.b16 %v483, %v479
  %v860 = vpack.c.b16 %v484, %v480
  %v861 = vpack.c.b16 %v489, %v485
  %v862 = vpack.c.b16 %v490, %v486
  %v863 = vpack.c.b16 %v491, %v487
  %v864 = vpack.c.b16 %v492, %v488
  %v865 = vpack.c.b16 %v497, %v493
  %v866 = vpack.c.b16 %v498, %v494
  %v867 = vpack.c.b16 %v499, %v495
  %v868 = vpack.c.b16 %v500, %v496
  %v869 = vpack.c.b16 %v505, %v501
  %v870 = vpack.c.b16 %v506, %v502
  %v871 = vpack.c.b16 %v507, %v503
  %v872 = vpack.c.b16 %v508, %v504
  %v873 = vpack.c.b16 %v513, %v509
  %v874 = vpack.c.b16 %v514, %v510
  %v875 = vpack.c.b16 %v515, %v511
  %v876 = vpack.c.b16 %v516, %v512
  %v877 = vpack.c.b16 %v521, %v517
  %v878 = vpack.c.b16 %v522, %v518
  %v879 = vpack.c.b16 %v523, %v519
  %v880 = vpack.c.b16 %v524, %v520
  %v881 = vpack.c.b16 %v529, %v525
  %v882 = vpack.c.b16 %v530, %v526
  %v883 = vpack.c.b16 %v531, %v527
  %v884 = vpack.c.b16 %v532, %v528
  %v885 = vpack.c.b16 %v537, %v533
  %v886 = vpack.c.b16 %v538, %v534
  %v887 = vpack.c.b16 %v539, %v535
  %v888 = vpack.c.b16 %v540, %v536
  %v889 = vpack.c.b16 %v545, %v541
  %v890 = vpack.c.b16 %v546, %v542
  %v891 = vpack.c.b16 %v547, %v543
  %v892 = vpack.c.b16 %v548, %v544
  %v893 = vpack.c.b16 %v553, %v549
  %v894 = vpack.c.b16 %v554, %v550
  %v895 = vpack.c.b16 %v555, %v551
  %v896 = vpack.c.b16 %v556, %v552
  %v897 = vpack.c.b16 %v561, %v557
  %v898 = vpack.c.b16 %v562, %v558
  %v899 = vpack.c.b16 %v563, %v559
  %v900 = vpack.c.b16 %v564, %v560
  %v901 = vpack.c.b16 %v569, %v565
  %v902 = vpack.c.b16 %v570, %v566
  %v903 = vpack.c.b16 %v571, %v567
  %v904 = vpack.c.b16 %v572, %v568
  %v905 = vpack.c.b16 %v577, %v573
  %v906 = vpack.c.b16 %v578, %v574
  %v907 = vpack.c.b16 %v579, %v575
  %v908 = vpack.c.b16 %v580, %v576
  %v909 = vpack.c.b16 %v585, %v581
  %v910 = vpack.c.b16 %v586, %v582
  %v911 = vpack.c.b16 %v587, %v583
  %v912 = vpack.c.b16 %v588, %v584
  %v913 = vpack.c.b16 %v593, %v589
  %v914 = vpack.c.b16 %v594, %v590
  %v915 = vpack.c.b16 %v595, %v591
  %v916 = vpack.c.b16 %v596, %v592
  %v917 = vpack.c.b16 %v601, %v597
  %v918 = vpack.c.b16 %v602, %v598
  %v919 = vpack.c.b16 %v603, %v599
  %v920 = vpack.c.b16 %v604, %v600
  %v921 = vpack.c.b16 %v609, %v605
  %v922 = vpack.c.b16 %v610, %v606
  %v923 = vpack.c.b16 %v611, %v607
  %v924 = vpack.c.b16 %v612, %v608
  %v925 = vpack.c.b16 %v617, %v613
  %v926 = vpack.c.b16 %v618, %v614
  %v927 = vpack.c.b16 %v619, %v615
  %v928 = vpack.c.b16 %v620, %v616
  %v929 = vpack.c.b16 %v625, %v621
  %v930 = vpack.c.b16 %v626, %v622
  %v931 = vpack.c.b16 %v627, %v623
  %v932 = vpack.c.b16 %v628, %v624
  %v933 = vpack.c.b16 %v633, %v629
  %v934 = vpack.c.b16 %v634, %v630
  %v935 = vpack.c.b16 %v635, %v631
  %v936 = vpack.c.b16 %v636, %v632
  %v937 = vpack.c.b16 %v641, %v637
  %v938 = vpack.c.b16 %v642, %v638
  %v939 = vpack.c.b16 %v643, %v639
  %v940 = vpack.c.b16 %v644, %v640
  %v941 = vpack.c.b16 %v649, %v645
  %v942 = vpack.c.b16 %v650, %v646
  %v943 = vpack.c.b16 %v651, %v647
  %v944 = vpack.c.b16 %v652, %v648
  %v945 = vpack.c.b16 %v657, %v653
  %v946 = vpack.c.b16 %v658, %v654
  %v947 = vpack.c.b16 %v659, %v655
  %v948 = vpack.c.b16 %v660, %v656
  %v949 = vpack.c.b16 %v665, %v661
  %v950 = vpack.c.b16 %v666, %v662
  %v951 = vpack.c.b16 %v667, %v663
  %v952 = vpack.c.b16 %v668, %v664
  %v953 = vpack.c.b16 %v673, %v669
  %v954 = vpack.c.b16 %v674, %v670
  %v955 = vpack.c.b16 %v675, %v671
  %v956 = vpack.c.b16 %v676, %v672
  %v957 = vpack.c.b16 %v681, %v677
  %v958 = vpack.c.b16 %v682, %v678
  %v959 = vpack.c.b16 %v683, %v679
  %v960 = vpack.c.b16 %v684, %v680
  %v961 = vpack.c.b16 %v689, %v685
  %v962 = vpack.c.b16 %v690, %v686
  %v963 = vpack.c.b16 %v691, %v687
  %v964 = vpack.c.b16 %v692, %v688
  %v965 = vpack.c.b16 %v697, %v693
  %v966 = vpack.c.b16 %v698, %v694
  %v967 = vpack.c.b16 %v699, %v695
  %v968 = vpack.c.b16 %v700, %v696
  %v969 = vpack.c.b16 %v705, %v701
  %v970 = vpack.c.b16 %v706, %v702
  %v971 = vpack.c.b16 %v707, %v703
  %v972 = vpack.c.b16 %v708, %v704
  %v973 = vpack.c.b16 %v713, %v709
  %v974 = vpack.c.b16 %v714, %v710
  %v975 = vpack.c.b16 %v715, %v711
  %v976 = vpack.c.b16 %v716, %v712
  %v977 = vpack.c.b16 %v721, %v717
  %v978 = vpack.c.b16 %v722, %v718
  %v979 = vpack.c.b16 %v723, %v719
  %v980 = vpack.c.b16 %v724, %v720
  %v981 = vpack.c.b16 %v729, %v725
  %v982 = vpack.c.b16 %v730, %v726
  %v983 = vpack.c.b16 %v731, %v727
  %v984 = vpack.c.b16 %v732, %v728
  %v985 = vpack.c.b16 %v737, %v733
  %v986 = vpack.c.b16 %v738, %v734
  %v987 = vpack.c.b16 %v739, %v735
  %v988 = vpack.c.b16 %v740, %v736
  %v989 = vpack.c.b16 %v745, %v741
  %v990 = vpack.c.b16 %v746, %v742
  %v991 = vpack.c.b16 %v747, %v743
  %v992 = vpack.c.b16 %v748, %v744
  %v993 = vpack.c.b16 %v753, %v749
  %v994 = vpack.c.b16 %v754, %v750
  %v995 = vpack.c.b16 %v755, %v751
  %v996 = vpack.c.b16 %v756, %v752
  %v997 = vpack.c.b16 %v761, %v757
  %v998 = vpack.c.b16 %v762, %v758
  %v999 = vpack.c.b16 %v763, %v759
  %v1000 = vpack.c.b16 %v764, %v760
  %v1001 = vpack.c.b16 %v769, %v765
  %v1002 = vpack.c.b16 %v770, %v766
  %v1003 = vpack.c.b16 %v771, %v767
  %v1004 = vpack.c.b16 %v772, %v768
  %v1005 = vpack.c.b16 %v777, %v773
  %v1006 = vpack.c.b16 %v778, %v774
  %v1007 = vpack.c.b16 %v779, %v775
  %v1008 = vpack.c.b16 %v780, %v776
  %v1009 = vpack.c.b16 %v785, %v781
  %v1010 = vpack.c.b16 %v786, %v782
  %v1011 = vpack.c.b16 %v787, %v783
  %v1012 = vpack.c.b16 %v788, %v784
  %v1013 = vpack.c.b16 %v793, %v789
  %v1014 = vpack.c.b16 %v794, %v790
  %v1015 = vpack.c.b16 %v795, %v791
  %v1016 = vpack.c.b16 %v796, %v792
  %v1017 = vpack.c.b16 %v801, %v797
  %v1018 = vpack.c.b16 %v802, %v798
  %v1019 = vpack.c.b16 %v803, %v799
  %v1020 = vpack.c.b16 %v804, %v800
  %v1021 = vpack.c.b16 %v809, %v805
  %v1022 = vpack.c.b16 %v810, %v806
  %v1023 = vpack.c.b16 %v811, %v807
  %v1024 = vpack.c.b16 %v812, %v808
  %v1025 = vpack.c.b16 %v817, %v813
  %v1026 = vpack.c.b16 %v818, %v814
  %v1027 = vpack.c.b16 %v819, %v815
  %v1028 = vpack.c.b16 %v820, %v816
  %v1029 = vpack.c.b16 %v825, %v821
  %v1030 = vpack.c.b16 %v826, %v822
  %v1031 = vpack.c.b16 %v827, %v823
  %v1032 = vpack.c.b16 %v828, %v824
  %v1033 = vpack.c.b16 %v833, %v829
  %v1034 = vpack.c.b16 %v834, %v830
  %v1035 = vpack.c.b16 %v835, %v831
  %v1036 = vpack.c.b16 %v836, %v832
  %v1037 = vpack.c.b16 %v841, %v837
  %v1038 = vpack.c.b16 %v842, %v838
  %v1039 = vpack.c.b16 %v843, %v839
  %v1040 = vpack.c.b16 %v844, %v840
  %v1041 = vpack.c.b16 %v849, %v845
  %v1042 = vpack.c.b16 %v850, %v846
  %v1043 = vpack.c.b16 %v851, %v847
  %v1044 = vpack.c.b16 %v852, %v848
  %1237 = vmatprep.subr.bf16.mxu0 %v854
  %1238 = vmatpush1.bf16.msra.mxu0 %v853
  %1239 = vmatprep.subr.bf16.mxu0 %v858
  %1240 = vmatpush1.bf16.msra.mxu0 %v857
  %1241 = vmatprep.subr.bf16.mxu0 %v862
  %1242 = vmatpush1.bf16.msra.mxu0 %v861
  %1243 = vmatprep.subr.bf16.mxu0 %v866
  %1244 = vmatpush1.bf16.msra.mxu0 %v865
  %1245 = vmatprep.subr.bf16.mxu0 %v870
  %1246 = vmatpush1.bf16.msra.mxu0 %v869
  %1247 = vmatprep.subr.bf16.mxu0 %v874
  %1248 = vmatpush1.bf16.msra.mxu0 %v873
  %1249 = vmatprep.subr.bf16.mxu0 %v878
  %1250 = vmatpush1.bf16.msra.mxu0 %v877
  %1251 = vmatprep.subr.bf16.mxu0 %v882
  %1252 = vmatpush1.bf16.msra.mxu0 %v881
  %1253 = vmatprep.subr.bf16.mxu0 %v886
  %1254 = vmatpush1.bf16.msra.mxu0 %v885
  %1255 = vmatprep.subr.bf16.mxu0 %v890
  %1256 = vmatpush1.bf16.msra.mxu0 %v889
  %1257 = vmatprep.subr.bf16.mxu0 %v894
  %1258 = vmatpush1.bf16.msra.mxu0 %v893
  %1259 = vmatprep.subr.bf16.mxu0 %v898
  %1260 = vmatpush1.bf16.msra.mxu0 %v897
  %1261 = vmatprep.subr.bf16.mxu0 %v902
  %1262 = vmatpush1.bf16.msra.mxu0 %v901
  %1263 = vmatprep.subr.bf16.mxu0 %v906
  %1264 = vmatpush1.bf16.msra.mxu0 %v905
  %1265 = vmatprep.subr.bf16.mxu0 %v910
  %1266 = vmatpush1.bf16.msra.mxu0 %v909
  %1267 = vmatprep.subr.bf16.mxu0 %v914
  %1268 = vmatpush1.bf16.msra.mxu0 %v913
  %1269 = vmatprep.mubr.bf16.mxu0 %v266
  %1270 = vmatmul.mubr.bf16.gmra.mrb[0].mxu0 %v265
  %v1271 = vpop.f32.mrb[0].mxu0
  %v1272 = vadd.f32 %v230, %v1271
  %v1273 = vpop.f32.mrb[0].mxu0
  %v1274 = vadd.f32 %v234, %v1273
  %v1275 = vpop.f32.mrb[0].mxu0
  %v1276 = vadd.f32 %v230, %v1275
  %v1277 = vpop.f32.mrb[0].mxu0
  %v1278 = vadd.f32 %v234, %v1277
  %1279 = vdwg.mxu0
  %1280 = vmatprep.subr.bf16.mxu0 %v918
  %1281 = vmatpush1.bf16.msra.mxu0 %v917
  %1282 = vmatprep.subr.bf16.mxu0 %v922
  %1283 = vmatpush1.bf16.msra.mxu0 %v921
  %1284 = vmatprep.subr.bf16.mxu0 %v926
  %1285 = vmatpush1.bf16.msra.mxu0 %v925
  %1286 = vmatprep.subr.bf16.mxu0 %v930
  %1287 = vmatpush1.bf16.msra.mxu0 %v929
  %1288 = vmatprep.subr.bf16.mxu0 %v934
  %1289 = vmatpush1.bf16.msra.mxu0 %v933
  %1290 = vmatprep.subr.bf16.mxu0 %v938
  %1291 = vmatpush1.bf16.msra.mxu0 %v937
  %1292 = vmatprep.subr.bf16.mxu0 %v942
  %1293 = vmatpush1.bf16.msra.mxu0 %v941
  %1294 = vmatprep.subr.bf16.mxu0 %v946
  %1295 = vmatpush1.bf16.msra.mxu0 %v945
  %1296 = vmatprep.subr.bf16.mxu0 %v950
  %1297 = vmatpush1.bf16.msra.mxu0 %v949
  %1298 = vmatprep.subr.bf16.mxu0 %v954
  %1299 = vmatpush1.bf16.msra.mxu0 %v953
  %1300 = vmatprep.subr.bf16.mxu0 %v958
  %1301 = vmatpush1.bf16.msra.mxu0 %v957
  %1302 = vmatprep.subr.bf16.mxu0 %v962
  %1303 = vmatpush1.bf16.msra.mxu0 %v961
  %1304 = vmatprep.subr.bf16.mxu0 %v966
  %1305 = vmatpush1.bf16.msra.mxu0 %v965
  %1306 = vmatprep.subr.bf16.mxu0 %v970
  %1307 = vmatpush1.bf16.msra.mxu0 %v969
  %1308 = vmatprep.subr.bf16.mxu0 %v974
  %1309 = vmatpush1.bf16.msra.mxu0 %v973
  %1310 = vmatprep.subr.bf16.mxu0 %v978
  %1311 = vmatpush1.bf16.msra.mxu0 %v977
  %1312 = vmatprep.mubr.bf16.mxu0 %v268
  %1313 = vmatmul.mubr.bf16.gmra.mrb[0].mxu0 %v267
  %v1314 = vpop.f32.mrb[0].mxu0
  %v1315 = vadd.f32 %v1272, %v1314
  %v1316 = vpop.f32.mrb[0].mxu0
  %v1317 = vadd.f32 %v1274, %v1316
  %v1318 = vpop.f32.mrb[0].mxu0
  %v1319 = vadd.f32 %v1276, %v1318
  %v1320 = vpop.f32.mrb[0].mxu0
  %v1321 = vadd.f32 %v1278, %v1320
  %1322 = vdwg.mxu0
  %1323 = vmatprep.subr.bf16.mxu0 %v982
  %1324 = vmatpush1.bf16.msra.mxu0 %v981
  %1325 = vmatprep.subr.bf16.mxu0 %v986
  %1326 = vmatpush1.bf16.msra.mxu0 %v985
  %1327 = vmatprep.subr.bf16.mxu0 %v990
  %1328 = vmatpush1.bf16.msra.mxu0 %v989
  %1329 = vmatprep.subr.bf16.mxu0 %v994
  %1330 = vmatpush1.bf16.msra.mxu0 %v993
  %1331 = vmatprep.subr.bf16.mxu0 %v998
  %1332 = vmatpush1.bf16.msra.mxu0 %v997
  %1333 = vmatprep.subr.bf16.mxu0 %v1002
  %1334 = vmatpush1.bf16.msra.mxu0 %v1001
  %1335 = vmatprep.subr.bf16.mxu0 %v1006
  %1336 = vmatpush1.bf16.msra.mxu0 %v1005
  %1337 = vmatprep.subr.bf16.mxu0 %v1010
  %1338 = vmatpush1.bf16.msra.mxu0 %v1009
  %1339 = vmatprep.subr.bf16.mxu0 %v1014
  %1340 = vmatpush1.bf16.msra.mxu0 %v1013
  %1341 = vmatprep.subr.bf16.mxu0 %v1018
  %1342 = vmatpush1.bf16.msra.mxu0 %v1017
  %1343 = vmatprep.subr.bf16.mxu0 %v1022
  %1344 = vmatpush1.bf16.msra.mxu0 %v1021
  %1345 = vmatprep.subr.bf16.mxu0 %v1026
  %1346 = vmatpush1.bf16.msra.mxu0 %v1025
  %1347 = vmatprep.subr.bf16.mxu0 %v1030
  %1348 = vmatpush1.bf16.msra.mxu0 %v1029
  %1349 = vmatprep.subr.bf16.mxu0 %v1034
  %1350 = vmatpush1.bf16.msra.mxu0 %v1033
  %1351 = vmatprep.subr.bf16.mxu0 %v1038
  %1352 = vmatpush1.bf16.msra.mxu0 %v1037
  %1353 = vmatprep.subr.bf16.mxu0 %v1042
  %1354 = vmatpush1.bf16.msra.mxu0 %v1041
  %1355 = vmatprep.mubr.bf16.mxu0 %v270
  %1356 = vmatmul.mubr.bf16.gmra.mrb[0].mxu0 %v269
  %v1357 = vpop.f32.mrb[0].mxu0
  %v1358 = vadd.f32 %v1315, %v1357
  %v1359 = vpop.f32.mrb[0].mxu0
  %v1360 = vadd.f32 %v1317, %v1359
  %v1361 = vpop.f32.mrb[0].mxu0
  %v1362 = vadd.f32 %v1319, %v1361
  %v1363 = vpop.f32.mrb[0].mxu0
  %v1364 = vadd.f32 %v1321, %v1363
  %1365 = vdwg.mxu0
  %1366 = vmatprep.subr.bf16.mxu0 %v856
  %1367 = vmatpush1.bf16.msra.mxu0 %v855
  %1368 = vmatprep.subr.bf16.mxu0 %v860
  %1369 = vmatpush1.bf16.msra.mxu0 %v859
  %1370 = vmatprep.subr.bf16.mxu0 %v864
  %1371 = vmatpush1.bf16.msra.mxu0 %v863
  %1372 = vmatprep.subr.bf16.mxu0 %v868
  %1373 = vmatpush1.bf16.msra.mxu0 %v867
  %1374 = vmatprep.subr.bf16.mxu0 %v872
  %1375 = vmatpush1.bf16.msra.mxu0 %v871
  %1376 = vmatprep.subr.bf16.mxu0 %v876
  %1377 = vmatpush1.bf16.msra.mxu0 %v875
  %1378 = vmatprep.subr.bf16.mxu0 %v880
  %1379 = vmatpush1.bf16.msra.mxu0 %v879
  %1380 = vmatprep.subr.bf16.mxu0 %v884
  %1381 = vmatpush1.bf16.msra.mxu0 %v883
  %1382 = vmatprep.subr.bf16.mxu0 %v888
  %1383 = vmatpush1.bf16.msra.mxu0 %v887
  %1384 = vmatprep.subr.bf16.mxu0 %v892
  %1385 = vmatpush1.bf16.msra.mxu0 %v891
  %1386 = vmatprep.subr.bf16.mxu0 %v896
  %1387 = vmatpush1.bf16.msra.mxu0 %v895
  %1388 = vmatprep.subr.bf16.mxu0 %v900
  %1389 = vmatpush1.bf16.msra.mxu0 %v899
  %1390 = vmatprep.subr.bf16.mxu0 %v904
  %1391 = vmatpush1.bf16.msra.mxu0 %v903
  %1392 = vmatprep.subr.bf16.mxu0 %v908
  %1393 = vmatpush1.bf16.msra.mxu0 %v907
  %1394 = vmatprep.subr.bf16.mxu0 %v912
  %1395 = vmatpush1.bf16.msra.mxu0 %v911
  %1396 = vmatprep.subr.bf16.mxu0 %v916
  %1397 = vmatpush1.bf16.msra.mxu0 %v915
  %1398 = vmatprep.mubr.bf16.mxu0 %v266
  %1399 = vmatmul.mubr.bf16.gmra.mrb[0].mxu0 %v265
  %v1400 = vpop.f32.mrb[0].mxu0
  %v1401 = vadd.f32 %v238, %v1400
  %v1402 = vpop.f32.mrb[0].mxu0
  %v1403 = vadd.f32 %v242, %v1402
  %v1404 = vpop.f32.mrb[0].mxu0
  %v1405 = vadd.f32 %v238, %v1404
  %v1406 = vpop.f32.mrb[0].mxu0
  %v1407 = vadd.f32 %v242, %v1406
  %1408 = vdwg.mxu0
  %1409 = vmatprep.subr.bf16.mxu0 %v920
  %1410 = vmatpush1.bf16.msra.mxu0 %v919
  %1411 = vmatprep.subr.bf16.mxu0 %v924
  %1412 = vmatpush1.bf16.msra.mxu0 %v923
  %1413 = vmatprep.subr.bf16.mxu0 %v928
  %1414 = vmatpush1.bf16.msra.mxu0 %v927
  %1415 = vmatprep.subr.bf16.mxu0 %v932
  %1416 = vmatpush1.bf16.msra.mxu0 %v931
  %1417 = vmatprep.subr.bf16.mxu0 %v936
  %1418 = vmatpush1.bf16.msra.mxu0 %v935
  %1419 = vmatprep.subr.bf16.mxu0 %v940
  %1420 = vmatpush1.bf16.msra.mxu0 %v939
  %1421 = vmatprep.subr.bf16.mxu0 %v944
  %1422 = vmatpush1.bf16.msra.mxu0 %v943
  %1423 = vmatprep.subr.bf16.mxu0 %v948
  %1424 = vmatpush1.bf16.msra.mxu0 %v947
  %1425 = vmatprep.subr.bf16.mxu0 %v952
  %1426 = vmatpush1.bf16.msra.mxu0 %v951
  %1427 = vmatprep.subr.bf16.mxu0 %v956
  %1428 = vmatpush1.bf16.msra.mxu0 %v955
  %1429 = vmatprep.subr.bf16.mxu0 %v960
  %1430 = vmatpush1.bf16.msra.mxu0 %v959
  %1431 = vmatprep.subr.bf16.mxu0 %v964
  %1432 = vmatpush1.bf16.msra.mxu0 %v963
  %1433 = vmatprep.subr.bf16.mxu0 %v968
  %1434 = vmatpush1.bf16.msra.mxu0 %v967
  %1435 = vmatprep.subr.bf16.mxu0 %v972
  %1436 = vmatpush1.bf16.msra.mxu0 %v971
  %1437 = vmatprep.subr.bf16.mxu0 %v976
  %1438 = vmatpush1.bf16.msra.mxu0 %v975
  %1439 = vmatprep.subr.bf16.mxu0 %v980
  %1440 = vmatpush1.bf16.msra.mxu0 %v979
  %1441 = vmatprep.mubr.bf16.mxu0 %v268
  %1442 = vmatmul.mubr.bf16.gmra.mrb[0].mxu0 %v267
  %v1443 = vpop.f32.mrb[0].mxu0
  %v1444 = vadd.f32 %v1401, %v1443
  %v1445 = vpop.f32.mrb[0].mxu0
  %v1446 = vadd.f32 %v1403, %v1445
  %v1447 = vpop.f32.mrb[0].mxu0
  %v1448 = vadd.f32 %v1405, %v1447
  %v1449 = vpop.f32.mrb[0].mxu0
  %v1450 = vadd.f32 %v1407, %v1449
  %1451 = vdwg.mxu0
  %1452 = vmatprep.subr.bf16.mxu0 %v984
  %1453 = vmatpush1.bf16.msra.mxu0 %v983
  %1454 = vmatprep.subr.bf16.mxu0 %v988
  %1455 = vmatpush1.bf16.msra.mxu0 %v987
  %1456 = vmatprep.subr.bf16.mxu0 %v992
  %1457 = vmatpush1.bf16.msra.mxu0 %v991
  %1458 = vmatprep.subr.bf16.mxu0 %v996
  %1459 = vmatpush1.bf16.msra.mxu0 %v995
  %1460 = vmatprep.subr.bf16.mxu0 %v1000
  %1461 = vmatpush1.bf16.msra.mxu0 %v999
  %1462 = vmatprep.subr.bf16.mxu0 %v1004
  %1463 = vmatpush1.bf16.msra.mxu0 %v1003
  %1464 = vmatprep.subr.bf16.mxu0 %v1008
  %1465 = vmatpush1.bf16.msra.mxu0 %v1007
  %1466 = vmatprep.subr.bf16.mxu0 %v1012
  %1467 = vmatpush1.bf16.msra.mxu0 %v1011
  %1468 = vmatprep.subr.bf16.mxu0 %v1016
  %1469 = vmatpush1.bf16.msra.mxu0 %v1015
  %1470 = vmatprep.subr.bf16.mxu0 %v1020
  %1471 = vmatpush1.bf16.msra.mxu0 %v1019
  %1472 = vmatprep.subr.bf16.mxu0 %v1024
  %1473 = vmatpush1.bf16.msra.mxu0 %v1023
  %1474 = vmatprep.subr.bf16.mxu0 %v1028
  %1475 = vmatpush1.bf16.msra.mxu0 %v1027
  %1476 = vmatprep.subr.bf16.mxu0 %v1032
  %1477 = vmatpush1.bf16.msra.mxu0 %v1031
  %1478 = vmatprep.subr.bf16.mxu0 %v1036
  %1479 = vmatpush1.bf16.msra.mxu0 %v1035
  %1480 = vmatprep.subr.bf16.mxu0 %v1040
  %1481 = vmatpush1.bf16.msra.mxu0 %v1039
  %1482 = vmatprep.subr.bf16.mxu0 %v1044
  %1483 = vmatpush1.bf16.msra.mxu0 %v1043
  %1484 = vmatprep.mubr.bf16.mxu0 %v270
  %1485 = vmatmul.mubr.bf16.gmra.mrb[0].mxu0 %v269
  %v1486 = vpop.f32.mrb[0].mxu0
  %v1487 = vadd.f32 %v1444, %v1486
  %v1488 = vpop.f32.mrb[0].mxu0
  %v1489 = vadd.f32 %v1446, %v1488
  %v1490 = vpop.f32.mrb[0].mxu0
  %v1491 = vadd.f32 %v1448, %v1490
  %v1492 = vpop.f32.mrb[0].mxu0
  %v1493 = vadd.f32 %v1450, %v1492
  %1494 = vdwg.mxu0
  %v1495 = vmax.f32 %v1358, 0.0
  %v1496 = vmax.f32 %v1360, 0.0
  %v1497 = vmax.f32 %v1487, 0.0
  %v1498 = vmax.f32 %v1489, 0.0
  %v1499 = vmax.f32 %v1362, 0.0
  %v1500 = vmax.f32 %v1364, 0.0
  %v1501 = vmax.f32 %v1491, 0.0
  %v1502 = vmax.f32 %v1493, 0.0
  %v1503 = vmul.f32 %v1495, %v1495
  %v1504 = vmul.f32 %v1496, %v1496
  %v1505 = vmul.f32 %v1497, %v1497
  %v1506 = vmul.f32 %v1498, %v1498
  %v1507 = vmul.f32 %v1499, %v1499
  %v1508 = vmul.f32 %v1500, %v1500
  %v1509 = vmul.f32 %v1501, %v1501
  %v1510 = vmul.f32 %v1502, %v1502
  %v1511 = vadd.f32 %v1503, %v1504
  %v1512 = vadd.f32 %v1511, %v1505
  %v1513 = vadd.f32 %v1512, %v1506
  %1514 = vadd.xlane.f32.xlu0 %v1513
  %v1515 = vpop.xlane.xlu0 %1514
  %v1516 = vadd.f32 %v1507, %v1508
  %v1517 = vadd.f32 %v1516, %v1509
  %v1518 = vadd.f32 %v1517, %v1510
  %1519 = vadd.xlane.f32.xlu0 %v1518
  %v1520 = vpop.xlane.xlu0 %1519
  %v1521 = vmax.f32 %v1515, 1e-16
  %v1522 = vmax.f32 %v1520, 1e-16
  %v1523 = vrsqrt.pop %v1521
  %v1524 = vrsqrt.pop %v1522
  %v1525 = vpack.c.bf16 %v1499, %v1495
  %v1526 = vpack.c.bf16 %v1500, %v1496
  %v1527 = vpack.c.bf16 %v1501, %v1497
  %v1528 = vpack.c.bf16 %v1502, %v1498
  %v1529 = vld [vmem:[%s3] sm:$0xf]
  %v1530 = vld [vmem:[%s3 + $0x4] sm:$0xf]
  %v1531 = vld [vmem:[%s3 + $0x8] sm:$0xf]
  %v1532 = vld [vmem:[%s3 + $0xc] sm:$0xf]
  %v1533 = vld [vmem:[%s3 + $0x10] sm:$0xf]
  %v1534 = vld [vmem:[%s3 + $0x14] sm:$0xf]
  %v1535 = vld [vmem:[%s3 + $0x18] sm:$0xf]
  %v1536 = vld [vmem:[%s3 + $0x1c] sm:$0xf]
  %v1537 = vld [vmem:[%s3 + $0x20] sm:$0xf]
  %v1538 = vld [vmem:[%s3 + $0x24] sm:$0xf]
  %v1539 = vld [vmem:[%s3 + $0x28] sm:$0xf]
  %v1540 = vld [vmem:[%s3 + $0x2c] sm:$0xf]
  %v1541 = vld [vmem:[%s3 + $0x30] sm:$0xf]
  %v1542 = vld [vmem:[%s3 + $0x34] sm:$0xf]
  %v1543 = vld [vmem:[%s3 + $0x38] sm:$0xf]
  %v1544 = vld [vmem:[%s3 + $0x3c] sm:$0xf]
  %v1545 = vld [vmem:[%s3 + $0x40] sm:$0xf]
  %v1546 = vld [vmem:[%s3 + $0x44] sm:$0xf]
  %v1547 = vld [vmem:[%s3 + $0x48] sm:$0xf]
  %v1548 = vld [vmem:[%s3 + $0x4c] sm:$0xf]
  %v1549 = vld [vmem:[%s3 + $0x50] sm:$0xf]
  %v1550 = vld [vmem:[%s3 + $0x54] sm:$0xf]
  %v1551 = vld [vmem:[%s3 + $0x58] sm:$0xf]
  %v1552 = vld [vmem:[%s3 + $0x5c] sm:$0xf]
  %v1553 = vld [vmem:[%s3 + $0x60] sm:$0xf]
  %v1554 = vld [vmem:[%s3 + $0x64] sm:$0xf]
  %v1555 = vld [vmem:[%s3 + $0x68] sm:$0xf]
  %v1556 = vld [vmem:[%s3 + $0x6c] sm:$0xf]
  %v1557 = vld [vmem:[%s3 + $0x70] sm:$0xf]
  %v1558 = vld [vmem:[%s3 + $0x74] sm:$0xf]
  %v1559 = vld [vmem:[%s3 + $0x78] sm:$0xf]
  %v1560 = vld [vmem:[%s3 + $0x7c] sm:$0xf]
  %v1561 = vld [vmem:[%s3 + $0x80] sm:$0xf]
  %v1562 = vld [vmem:[%s3 + $0x84] sm:$0xf]
  %v1563 = vld [vmem:[%s3 + $0x88] sm:$0xf]
  %v1564 = vld [vmem:[%s3 + $0x8c] sm:$0xf]
  %v1565 = vld [vmem:[%s3 + $0x90] sm:$0xf]
  %v1566 = vld [vmem:[%s3 + $0x94] sm:$0xf]
  %v1567 = vld [vmem:[%s3 + $0x98] sm:$0xf]
  %v1568 = vld [vmem:[%s3 + $0x9c] sm:$0xf]
  %v1569 = vld [vmem:[%s3 + $0xa0] sm:$0xf]
  %v1570 = vld [vmem:[%s3 + $0xa4] sm:$0xf]
  %v1571 = vld [vmem:[%s3 + $0xa8] sm:$0xf]
  %v1572 = vld [vmem:[%s3 + $0xac] sm:$0xf]
  %v1573 = vld [vmem:[%s3 + $0xb0] sm:$0xf]
  %v1574 = vld [vmem:[%s3 + $0xb4] sm:$0xf]
  %v1575 = vld [vmem:[%s3 + $0xb8] sm:$0xf]
  %v1576 = vld [vmem:[%s3 + $0xbc] sm:$0xf]
  %v1577 = vld [vmem:[%s3 + $0xc0] sm:$0xf]
  %v1578 = vld [vmem:[%s3 + $0xc4] sm:$0xf]
  %v1579 = vld [vmem:[%s3 + $0xc8] sm:$0xf]
  %v1580 = vld [vmem:[%s3 + $0xcc] sm:$0xf]
  %v1581 = vld [vmem:[%s3 + $0xd0] sm:$0xf]
  %v1582 = vld [vmem:[%s3 + $0xd4] sm:$0xf]
  %v1583 = vld [vmem:[%s3 + $0xd8] sm:$0xf]
  %v1584 = vld [vmem:[%s3 + $0xdc] sm:$0xf]
  %v1585 = vld [vmem:[%s3 + $0xe0] sm:$0xf]
  %v1586 = vld [vmem:[%s3 + $0xe4] sm:$0xf]
  %v1587 = vld [vmem:[%s3 + $0xe8] sm:$0xf]
  %v1588 = vld [vmem:[%s3 + $0xec] sm:$0xf]
  %v1589 = vld [vmem:[%s3 + $0xf0] sm:$0xf]
  %v1590 = vld [vmem:[%s3 + $0xf4] sm:$0xf]
  %v1591 = vld [vmem:[%s3 + $0xf8] sm:$0xf]
  %v1592 = vld [vmem:[%s3 + $0xfc] sm:$0xf]
  %v1657 = vunpack.c.l.b16 %v1529
  %v1658 = vunpack.c.l.b16 %v1530
  %v1659 = vunpack.c.l.b16 %v1531
  %v1660 = vunpack.c.l.b16 %v1532
  %v1661 = vunpack.c.l.b16 %v1533
  %v1662 = vunpack.c.l.b16 %v1534
  %v1663 = vunpack.c.l.b16 %v1535
  %v1664 = vunpack.c.l.b16 %v1536
  %v1665 = vunpack.c.l.b16 %v1537
  %v1666 = vunpack.c.l.b16 %v1538
  %v1667 = vunpack.c.l.b16 %v1539
  %v1668 = vunpack.c.l.b16 %v1540
  %v1669 = vunpack.c.l.b16 %v1541
  %v1670 = vunpack.c.l.b16 %v1542
  %v1671 = vunpack.c.l.b16 %v1543
  %v1672 = vunpack.c.l.b16 %v1544
  %v1673 = vunpack.c.l.b16 %v1545
  %v1674 = vunpack.c.l.b16 %v1546
  %v1675 = vunpack.c.l.b16 %v1547
  %v1676 = vunpack.c.l.b16 %v1548
  %v1677 = vunpack.c.l.b16 %v1549
  %v1678 = vunpack.c.l.b16 %v1550
  %v1679 = vunpack.c.l.b16 %v1551
  %v1680 = vunpack.c.l.b16 %v1552
  %v1681 = vunpack.c.l.b16 %v1553
  %v1682 = vunpack.c.l.b16 %v1554
  %v1683 = vunpack.c.l.b16 %v1555
  %v1684 = vunpack.c.l.b16 %v1556
  %v1685 = vunpack.c.l.b16 %v1557
  %v1686 = vunpack.c.l.b16 %v1558
  %v1687 = vunpack.c.l.b16 %v1559
  %v1688 = vunpack.c.l.b16 %v1560
  %v1689 = vunpack.c.l.b16 %v1561
  %v1690 = vunpack.c.l.b16 %v1562
  %v1691 = vunpack.c.l.b16 %v1563
  %v1692 = vunpack.c.l.b16 %v1564
  %v1693 = vunpack.c.l.b16 %v1565
  %v1694 = vunpack.c.l.b16 %v1566
  %v1695 = vunpack.c.l.b16 %v1567
  %v1696 = vunpack.c.l.b16 %v1568
  %v1697 = vunpack.c.l.b16 %v1569
  %v1698 = vunpack.c.l.b16 %v1570
  %v1699 = vunpack.c.l.b16 %v1571
  %v1700 = vunpack.c.l.b16 %v1572
  %v1701 = vunpack.c.l.b16 %v1573
  %v1702 = vunpack.c.l.b16 %v1574
  %v1703 = vunpack.c.l.b16 %v1575
  %v1704 = vunpack.c.l.b16 %v1576
  %v1705 = vunpack.c.l.b16 %v1577
  %v1706 = vunpack.c.l.b16 %v1578
  %v1707 = vunpack.c.l.b16 %v1579
  %v1708 = vunpack.c.l.b16 %v1580
  %v1709 = vunpack.c.l.b16 %v1581
  %v1710 = vunpack.c.l.b16 %v1582
  %v1711 = vunpack.c.l.b16 %v1583
  %v1712 = vunpack.c.l.b16 %v1584
  %v1713 = vunpack.c.l.b16 %v1585
  %v1714 = vunpack.c.l.b16 %v1586
  %v1715 = vunpack.c.l.b16 %v1587
  %v1716 = vunpack.c.l.b16 %v1588
  %v1717 = vunpack.c.l.b16 %v1589
  %v1718 = vunpack.c.l.b16 %v1590
  %v1719 = vunpack.c.l.b16 %v1591
  %v1720 = vunpack.c.l.b16 %v1592
  %v1721 = vpack.c.b16 %v1658, %v1657
  %v1722 = vpack.c.b16 %v1660, %v1659
  %v1723 = vpack.c.b16 %v1662, %v1661
  %v1724 = vpack.c.b16 %v1664, %v1663
  %v1725 = vpack.c.b16 %v1666, %v1665
  %v1726 = vpack.c.b16 %v1668, %v1667
  %v1727 = vpack.c.b16 %v1670, %v1669
  %v1728 = vpack.c.b16 %v1672, %v1671
  %v1729 = vpack.c.b16 %v1674, %v1673
  %v1730 = vpack.c.b16 %v1676, %v1675
  %v1731 = vpack.c.b16 %v1678, %v1677
  %v1732 = vpack.c.b16 %v1680, %v1679
  %v1733 = vpack.c.b16 %v1682, %v1681
  %v1734 = vpack.c.b16 %v1684, %v1683
  %v1735 = vpack.c.b16 %v1686, %v1685
  %v1736 = vpack.c.b16 %v1688, %v1687
  %v1737 = vpack.c.b16 %v1690, %v1689
  %v1738 = vpack.c.b16 %v1692, %v1691
  %v1739 = vpack.c.b16 %v1694, %v1693
  %v1740 = vpack.c.b16 %v1696, %v1695
  %v1741 = vpack.c.b16 %v1698, %v1697
  %v1742 = vpack.c.b16 %v1700, %v1699
  %v1743 = vpack.c.b16 %v1702, %v1701
  %v1744 = vpack.c.b16 %v1704, %v1703
  %v1745 = vpack.c.b16 %v1706, %v1705
  %v1746 = vpack.c.b16 %v1708, %v1707
  %v1747 = vpack.c.b16 %v1710, %v1709
  %v1748 = vpack.c.b16 %v1712, %v1711
  %v1749 = vpack.c.b16 %v1714, %v1713
  %v1750 = vpack.c.b16 %v1716, %v1715
  %v1751 = vpack.c.b16 %v1718, %v1717
  %v1752 = vpack.c.b16 %v1720, %v1719
  %1785 = vmatprep.subr.bf16.mxu0 0
  %1786 = vmatpush1.bf16.msra.mxu0 %v1721
  %1787 = vmatprep.subr.bf16.mxu0 0
  %1788 = vmatpush1.bf16.msra.mxu0 %v1722
  %1789 = vmatprep.subr.bf16.mxu0 0
  %1790 = vmatpush1.bf16.msra.mxu0 %v1723
  %1791 = vmatprep.subr.bf16.mxu0 0
  %1792 = vmatpush1.bf16.msra.mxu0 %v1724
  %1793 = vmatprep.subr.bf16.mxu0 0
  %1794 = vmatpush1.bf16.msra.mxu0 %v1725
  %1795 = vmatprep.subr.bf16.mxu0 0
  %1796 = vmatpush1.bf16.msra.mxu0 %v1726
  %1797 = vmatprep.subr.bf16.mxu0 0
  %1798 = vmatpush1.bf16.msra.mxu0 %v1727
  %1799 = vmatprep.subr.bf16.mxu0 0
  %1800 = vmatpush1.bf16.msra.mxu0 %v1728
  %1801 = vmatprep.subr.bf16.mxu0 0
  %1802 = vmatpush1.bf16.msra.mxu0 %v1729
  %1803 = vmatprep.subr.bf16.mxu0 0
  %1804 = vmatpush1.bf16.msra.mxu0 %v1730
  %1805 = vmatprep.subr.bf16.mxu0 0
  %1806 = vmatpush1.bf16.msra.mxu0 %v1731
  %1807 = vmatprep.subr.bf16.mxu0 0
  %1808 = vmatpush1.bf16.msra.mxu0 %v1732
  %1809 = vmatprep.subr.bf16.mxu0 0
  %1810 = vmatpush1.bf16.msra.mxu0 %v1733
  %1811 = vmatprep.subr.bf16.mxu0 0
  %1812 = vmatpush1.bf16.msra.mxu0 %v1734
  %1813 = vmatprep.subr.bf16.mxu0 0
  %1814 = vmatpush1.bf16.msra.mxu0 %v1735
  %1815 = vmatprep.subr.bf16.mxu0 0
  %1816 = vmatpush1.bf16.msra.mxu0 %v1736
  %1817 = vmatprep.mubr.bf16.mxu0 %v1526
  %1818 = vmatmul.mubr.bf16.gmra.mrb[0].mxu0 %v1525
  %v1819 = vpop.f32.mrb[0].mxu0
  %v1820 = vadd.f32 0.0, %v1819
  %v1821 = vpop.f32.mrb[0].mxu0
  %v1822 = vpop.f32.mrb[0].mxu0
  %v1823 = vadd.f32 0.0, %v1822
  %v1824 = vpop.f32.mrb[0].mxu0
  %1825 = vdwg.mxu0
  %1826 = vmatprep.subr.bf16.mxu0 0
  %1827 = vmatpush1.bf16.msra.mxu0 %v1737
  %1828 = vmatprep.subr.bf16.mxu0 0
  %1829 = vmatpush1.bf16.msra.mxu0 %v1738
  %1830 = vmatprep.subr.bf16.mxu0 0
  %1831 = vmatpush1.bf16.msra.mxu0 %v1739
  %1832 = vmatprep.subr.bf16.mxu0 0
  %1833 = vmatpush1.bf16.msra.mxu0 %v1740
  %1834 = vmatprep.subr.bf16.mxu0 0
  %1835 = vmatpush1.bf16.msra.mxu0 %v1741
  %1836 = vmatprep.subr.bf16.mxu0 0
  %1837 = vmatpush1.bf16.msra.mxu0 %v1742
  %1838 = vmatprep.subr.bf16.mxu0 0
  %1839 = vmatpush1.bf16.msra.mxu0 %v1743
  %1840 = vmatprep.subr.bf16.mxu0 0
  %1841 = vmatpush1.bf16.msra.mxu0 %v1744
  %1842 = vmatprep.subr.bf16.mxu0 0
  %1843 = vmatpush1.bf16.msra.mxu0 %v1745
  %1844 = vmatprep.subr.bf16.mxu0 0
  %1845 = vmatpush1.bf16.msra.mxu0 %v1746
  %1846 = vmatprep.subr.bf16.mxu0 0
  %1847 = vmatpush1.bf16.msra.mxu0 %v1747
  %1848 = vmatprep.subr.bf16.mxu0 0
  %1849 = vmatpush1.bf16.msra.mxu0 %v1748
  %1850 = vmatprep.subr.bf16.mxu0 0
  %1851 = vmatpush1.bf16.msra.mxu0 %v1749
  %1852 = vmatprep.subr.bf16.mxu0 0
  %1853 = vmatpush1.bf16.msra.mxu0 %v1750
  %1854 = vmatprep.subr.bf16.mxu0 0
  %1855 = vmatpush1.bf16.msra.mxu0 %v1751
  %1856 = vmatprep.subr.bf16.mxu0 0
  %1857 = vmatpush1.bf16.msra.mxu0 %v1752
  %1858 = vmatprep.mubr.bf16.mxu0 %v1528
  %1859 = vmatmul.mubr.bf16.gmra.mrb[0].mxu0 %v1527
  %v1860 = vpop.f32.mrb[0].mxu0
  %v1861 = vadd.f32 %v1820, %v1860
  %v1862 = vpop.f32.mrb[0].mxu0
  %v1863 = vpop.f32.mrb[0].mxu0
  %v1864 = vadd.f32 %v1823, %v1863
  %v1865 = vpop.f32.mrb[0].mxu0
  %1866 = vdwg.mxu0
  %v1867 = vmul.f32 %v1861, %v1523
  %v1868 = vmul.f32 %v1864, %v1524
  %v1869 = vld [vmem:[%s4] sm:$0xf]
  %v1870 = vld [vmem:[%s4 + $0x4] sm:$0xf]
  %v1871 = vld [vmem:[%s4 + $0x8] sm:$0xf]
  %v1872 = vld [vmem:[%s4 + $0xc] sm:$0xf]
  %v1873 = vld [vmem:[%s4 + $0x10] sm:$0xf]
  %v1874 = vld [vmem:[%s4 + $0x14] sm:$0xf]
  %v1875 = vld [vmem:[%s4 + $0x18] sm:$0xf]
  %v1876 = vld [vmem:[%s4 + $0x1c] sm:$0xf]
  %v1877 = vld [vmem:[%s4 + $0x20] sm:$0xf]
  %v1878 = vld [vmem:[%s4 + $0x24] sm:$0xf]
  %v1879 = vld [vmem:[%s4 + $0x28] sm:$0xf]
  %v1880 = vld [vmem:[%s4 + $0x2c] sm:$0xf]
  %v1881 = vld [vmem:[%s4 + $0x30] sm:$0xf]
  %v1882 = vld [vmem:[%s4 + $0x34] sm:$0xf]
  %v1883 = vld [vmem:[%s4 + $0x38] sm:$0xf]
  %v1884 = vld [vmem:[%s4 + $0x3c] sm:$0xf]
  %v1885 = vld [vmem:[%s4 + $0x40] sm:$0xf]
  %v1886 = vld [vmem:[%s4 + $0x44] sm:$0xf]
  %v1887 = vld [vmem:[%s4 + $0x48] sm:$0xf]
  %v1888 = vld [vmem:[%s4 + $0x4c] sm:$0xf]
  %v1889 = vld [vmem:[%s4 + $0x50] sm:$0xf]
  %v1890 = vld [vmem:[%s4 + $0x54] sm:$0xf]
  %v1891 = vld [vmem:[%s4 + $0x58] sm:$0xf]
  %v1892 = vld [vmem:[%s4 + $0x5c] sm:$0xf]
  %v1893 = vld [vmem:[%s4 + $0x60] sm:$0xf]
  %v1894 = vld [vmem:[%s4 + $0x64] sm:$0xf]
  %v1895 = vld [vmem:[%s4 + $0x68] sm:$0xf]
  %v1896 = vld [vmem:[%s4 + $0x6c] sm:$0xf]
  %v1897 = vld [vmem:[%s4 + $0x70] sm:$0xf]
  %v1898 = vld [vmem:[%s4 + $0x74] sm:$0xf]
  %v1899 = vld [vmem:[%s4 + $0x78] sm:$0xf]
  %v1900 = vld [vmem:[%s4 + $0x7c] sm:$0xf]
  %v1901 = vld [vmem:[%s4 + $0x80] sm:$0xf]
  %v1902 = vld [vmem:[%s4 + $0x84] sm:$0xf]
  %v1903 = vld [vmem:[%s4 + $0x88] sm:$0xf]
  %v1904 = vld [vmem:[%s4 + $0x8c] sm:$0xf]
  %v1905 = vld [vmem:[%s4 + $0x90] sm:$0xf]
  %v1906 = vld [vmem:[%s4 + $0x94] sm:$0xf]
  %v1907 = vld [vmem:[%s4 + $0x98] sm:$0xf]
  %v1908 = vld [vmem:[%s4 + $0x9c] sm:$0xf]
  %v1909 = vld [vmem:[%s4 + $0xa0] sm:$0xf]
  %v1910 = vld [vmem:[%s4 + $0xa4] sm:$0xf]
  %v1911 = vld [vmem:[%s4 + $0xa8] sm:$0xf]
  %v1912 = vld [vmem:[%s4 + $0xac] sm:$0xf]
  %v1913 = vld [vmem:[%s4 + $0xb0] sm:$0xf]
  %v1914 = vld [vmem:[%s4 + $0xb4] sm:$0xf]
  %v1915 = vld [vmem:[%s4 + $0xb8] sm:$0xf]
  %v1916 = vld [vmem:[%s4 + $0xbc] sm:$0xf]
  %v1917 = vld [vmem:[%s4 + $0xc0] sm:$0xf]
  %v1918 = vld [vmem:[%s4 + $0xc4] sm:$0xf]
  %v1919 = vld [vmem:[%s4 + $0xc8] sm:$0xf]
  %v1920 = vld [vmem:[%s4 + $0xcc] sm:$0xf]
  %v1921 = vld [vmem:[%s4 + $0xd0] sm:$0xf]
  %v1922 = vld [vmem:[%s4 + $0xd4] sm:$0xf]
  %v1923 = vld [vmem:[%s4 + $0xd8] sm:$0xf]
  %v1924 = vld [vmem:[%s4 + $0xdc] sm:$0xf]
  %v1925 = vld [vmem:[%s4 + $0xe0] sm:$0xf]
  %v1926 = vld [vmem:[%s4 + $0xe4] sm:$0xf]
  %v1927 = vld [vmem:[%s4 + $0xe8] sm:$0xf]
  %v1928 = vld [vmem:[%s4 + $0xec] sm:$0xf]
  %v1929 = vld [vmem:[%s4 + $0xf0] sm:$0xf]
  %v1930 = vld [vmem:[%s4 + $0xf4] sm:$0xf]
  %v1931 = vld [vmem:[%s4 + $0xf8] sm:$0xf]
  %v1932 = vld [vmem:[%s4 + $0xfc] sm:$0xf]
  %v1933 = vpack.c.bf16 %v1868, %v1867
  %v1934 = vld [vmem:[%s5] sm:$0xf]
  %v1935 = vld [vmem:[%s5 + $0x4] sm:$0xf]
  %v1936 = vld [vmem:[%s5 + $0x8] sm:$0xf]
  %v1937 = vld [vmem:[%s5 + $0xc] sm:$0xf]
  %v1938 = vld [vmem:[%s5 + $0x10] sm:$0xf]
  %v1939 = vld [vmem:[%s5 + $0x14] sm:$0xf]
  %v1940 = vld [vmem:[%s5 + $0x18] sm:$0xf]
  %v1941 = vld [vmem:[%s5 + $0x1c] sm:$0xf]
  %v1942 = vld [vmem:[%s5 + $0x20] sm:$0xf]
  %v1943 = vld [vmem:[%s5 + $0x24] sm:$0xf]
  %v1944 = vld [vmem:[%s5 + $0x28] sm:$0xf]
  %v1945 = vld [vmem:[%s5 + $0x2c] sm:$0xf]
  %v1946 = vld [vmem:[%s5 + $0x30] sm:$0xf]
  %v1947 = vld [vmem:[%s5 + $0x34] sm:$0xf]
  %v1948 = vld [vmem:[%s5 + $0x38] sm:$0xf]
  %v1949 = vld [vmem:[%s5 + $0x3c] sm:$0xf]
  %v1966 = vunpack.c.l.b16 %v1934
  %v1967 = vunpack.c.l.b16 %v1935
  %v1968 = vunpack.c.l.b16 %v1936
  %v1969 = vunpack.c.l.b16 %v1937
  %v1970 = vunpack.c.l.b16 %v1938
  %v1971 = vunpack.c.l.b16 %v1939
  %v1972 = vunpack.c.l.b16 %v1940
  %v1973 = vunpack.c.l.b16 %v1941
  %v1974 = vunpack.c.l.b16 %v1942
  %v1975 = vunpack.c.l.b16 %v1943
  %v1976 = vunpack.c.l.b16 %v1944
  %v1977 = vunpack.c.l.b16 %v1945
  %v1978 = vunpack.c.l.b16 %v1946
  %v1979 = vunpack.c.l.b16 %v1947
  %v1980 = vunpack.c.l.b16 %v1948
  %v1981 = vunpack.c.l.b16 %v1949
  %v1982 = vpack.c.b16 %v1967, %v1966
  %v1983 = vpack.c.b16 %v1969, %v1968
  %v1984 = vpack.c.b16 %v1971, %v1970
  %v1985 = vpack.c.b16 %v1973, %v1972
  %v1986 = vpack.c.b16 %v1975, %v1974
  %v1987 = vpack.c.b16 %v1977, %v1976
  %v1988 = vpack.c.b16 %v1979, %v1978
  %v1989 = vpack.c.b16 %v1981, %v1980
  %1998 = vmatprep.subr.bf16.mxu0 0
  %1999 = vmatpush1.bf16.msra.mxu0 %v1982
  %2000 = vmatprep.subr.bf16.mxu0 0
  %2001 = vmatpush1.bf16.msra.mxu0 %v1983
  %2002 = vmatprep.subr.bf16.mxu0 0
  %2003 = vmatpush1.bf16.msra.mxu0 %v1984
  %2004 = vmatprep.subr.bf16.mxu0 0
  %2005 = vmatpush1.bf16.msra.mxu0 %v1985
  %2006 = vmatprep.subr.bf16.mxu0 0
  %2007 = vmatpush1.bf16.msra.mxu0 %v1986
  %2008 = vmatprep.subr.bf16.mxu0 0
  %2009 = vmatpush1.bf16.msra.mxu0 %v1987
  %2010 = vmatprep.subr.bf16.mxu0 0
  %2011 = vmatpush1.bf16.msra.mxu0 %v1988
  %2012 = vmatprep.subr.bf16.mxu0 0
  %2013 = vmatpush1.bf16.msra.mxu0 %v1989
  %2014 = vmatprep.subr.bf16.mxu0 0
  %2015 = vmatpush1.bf16.msra.mxu0 0
  %2016 = vmatprep.subr.bf16.mxu0 0
  %2017 = vmatpush1.bf16.msra.mxu0 0
  %2018 = vmatprep.subr.bf16.mxu0 0
  %2019 = vmatpush1.bf16.msra.mxu0 0
  %2020 = vmatprep.subr.bf16.mxu0 0
  %2021 = vmatpush1.bf16.msra.mxu0 0
  %2022 = vmatprep.subr.bf16.mxu0 0
  %2023 = vmatpush1.bf16.msra.mxu0 0
  %2024 = vmatprep.subr.bf16.mxu0 0
  %2025 = vmatpush1.bf16.msra.mxu0 0
  %2026 = vmatprep.subr.bf16.mxu0 0
  %2027 = vmatpush1.bf16.msra.mxu0 0
  %2028 = vmatprep.subr.bf16.mxu0 0
  %2029 = vmatpush1.bf16.msra.mxu0 0
  %2030 = vmatprep.mubr.bf16.mxu0 0
  %2031 = vmatmul.mubr.bf16.gmra.mrb[0].mxu0 %v1933
  %v2032 = vpop.f32.mrb[0].mxu0
  %v2033 = vadd.f32 0.0, %v2032
  %v2034 = vpop.f32.mrb[0].mxu0
  %v2035 = vpop.f32.mrb[0].mxu0
  %v2036 = vadd.f32 0.0, %v2035
  %v2037 = vpop.f32.mrb[0].mxu0
  %2038 = vdwg.mxu0
  %v2103 = vunpack.c.l.b16 %v1869
  %v2104 = vunpack.c.l.b16 %v1870
  %v2105 = vunpack.c.l.b16 %v1871
  %v2106 = vunpack.c.l.b16 %v1872
  %v2107 = vunpack.c.l.b16 %v1873
  %v2108 = vunpack.c.l.b16 %v1874
  %v2109 = vunpack.c.l.b16 %v1875
  %v2110 = vunpack.c.l.b16 %v1876
  %v2111 = vunpack.c.l.b16 %v1877
  %v2112 = vunpack.c.l.b16 %v1878
  %v2113 = vunpack.c.l.b16 %v1879
  %v2114 = vunpack.c.l.b16 %v1880
  %v2115 = vunpack.c.l.b16 %v1881
  %v2116 = vunpack.c.l.b16 %v1882
  %v2117 = vunpack.c.l.b16 %v1883
  %v2118 = vunpack.c.l.b16 %v1884
  %v2119 = vunpack.c.l.b16 %v1885
  %v2120 = vunpack.c.l.b16 %v1886
  %v2121 = vunpack.c.l.b16 %v1887
  %v2122 = vunpack.c.l.b16 %v1888
  %v2123 = vunpack.c.l.b16 %v1889
  %v2124 = vunpack.c.l.b16 %v1890
  %v2125 = vunpack.c.l.b16 %v1891
  %v2126 = vunpack.c.l.b16 %v1892
  %v2127 = vunpack.c.l.b16 %v1893
  %v2128 = vunpack.c.l.b16 %v1894
  %v2129 = vunpack.c.l.b16 %v1895
  %v2130 = vunpack.c.l.b16 %v1896
  %v2131 = vunpack.c.l.b16 %v1897
  %v2132 = vunpack.c.l.b16 %v1898
  %v2133 = vunpack.c.l.b16 %v1899
  %v2134 = vunpack.c.l.b16 %v1900
  %v2135 = vunpack.c.l.b16 %v1901
  %v2136 = vunpack.c.l.b16 %v1902
  %v2137 = vunpack.c.l.b16 %v1903
  %v2138 = vunpack.c.l.b16 %v1904
  %v2139 = vunpack.c.l.b16 %v1905
  %v2140 = vunpack.c.l.b16 %v1906
  %v2141 = vunpack.c.l.b16 %v1907
  %v2142 = vunpack.c.l.b16 %v1908
  %v2143 = vunpack.c.l.b16 %v1909
  %v2144 = vunpack.c.l.b16 %v1910
  %v2145 = vunpack.c.l.b16 %v1911
  %v2146 = vunpack.c.l.b16 %v1912
  %v2147 = vunpack.c.l.b16 %v1913
  %v2148 = vunpack.c.l.b16 %v1914
  %v2149 = vunpack.c.l.b16 %v1915
  %v2150 = vunpack.c.l.b16 %v1916
  %v2151 = vunpack.c.l.b16 %v1917
  %v2152 = vunpack.c.l.b16 %v1918
  %v2153 = vunpack.c.l.b16 %v1919
  %v2154 = vunpack.c.l.b16 %v1920
  %v2155 = vunpack.c.l.b16 %v1921
  %v2156 = vunpack.c.l.b16 %v1922
  %v2157 = vunpack.c.l.b16 %v1923
  %v2158 = vunpack.c.l.b16 %v1924
  %v2159 = vunpack.c.l.b16 %v1925
  %v2160 = vunpack.c.l.b16 %v1926
  %v2161 = vunpack.c.l.b16 %v1927
  %v2162 = vunpack.c.l.b16 %v1928
  %v2163 = vunpack.c.l.b16 %v1929
  %v2164 = vunpack.c.l.b16 %v1930
  %v2165 = vunpack.c.l.b16 %v1931
  %v2166 = vunpack.c.l.b16 %v1932
  %v2167 = vpack.c.b16 %v2104, %v2103
  %v2168 = vpack.c.b16 %v2106, %v2105
  %v2169 = vpack.c.b16 %v2108, %v2107
  %v2170 = vpack.c.b16 %v2110, %v2109
  %v2171 = vpack.c.b16 %v2112, %v2111
  %v2172 = vpack.c.b16 %v2114, %v2113
  %v2173 = vpack.c.b16 %v2116, %v2115
  %v2174 = vpack.c.b16 %v2118, %v2117
  %v2175 = vpack.c.b16 %v2120, %v2119
  %v2176 = vpack.c.b16 %v2122, %v2121
  %v2177 = vpack.c.b16 %v2124, %v2123
  %v2178 = vpack.c.b16 %v2126, %v2125
  %v2179 = vpack.c.b16 %v2128, %v2127
  %v2180 = vpack.c.b16 %v2130, %v2129
  %v2181 = vpack.c.b16 %v2132, %v2131
  %v2182 = vpack.c.b16 %v2134, %v2133
  %v2183 = vpack.c.b16 %v2136, %v2135
  %v2184 = vpack.c.b16 %v2138, %v2137
  %v2185 = vpack.c.b16 %v2140, %v2139
  %v2186 = vpack.c.b16 %v2142, %v2141
  %v2187 = vpack.c.b16 %v2144, %v2143
  %v2188 = vpack.c.b16 %v2146, %v2145
  %v2189 = vpack.c.b16 %v2148, %v2147
  %v2190 = vpack.c.b16 %v2150, %v2149
  %v2191 = vpack.c.b16 %v2152, %v2151
  %v2192 = vpack.c.b16 %v2154, %v2153
  %v2193 = vpack.c.b16 %v2156, %v2155
  %v2194 = vpack.c.b16 %v2158, %v2157
  %v2195 = vpack.c.b16 %v2160, %v2159
  %v2196 = vpack.c.b16 %v2162, %v2161
  %v2197 = vpack.c.b16 %v2164, %v2163
  %v2198 = vpack.c.b16 %v2166, %v2165
  %2231 = vmatprep.subr.bf16.mxu0 0
  %2232 = vmatpush1.bf16.msra.mxu0 %v2167
  %2233 = vmatprep.subr.bf16.mxu0 0
  %2234 = vmatpush1.bf16.msra.mxu0 %v2168
  %2235 = vmatprep.subr.bf16.mxu0 0
  %2236 = vmatpush1.bf16.msra.mxu0 %v2169
  %2237 = vmatprep.subr.bf16.mxu0 0
  %2238 = vmatpush1.bf16.msra.mxu0 %v2170
  %2239 = vmatprep.subr.bf16.mxu0 0
  %2240 = vmatpush1.bf16.msra.mxu0 %v2171
  %2241 = vmatprep.subr.bf16.mxu0 0
  %2242 = vmatpush1.bf16.msra.mxu0 %v2172
  %2243 = vmatprep.subr.bf16.mxu0 0
  %2244 = vmatpush1.bf16.msra.mxu0 %v2173
  %2245 = vmatprep.subr.bf16.mxu0 0
  %2246 = vmatpush1.bf16.msra.mxu0 %v2174
  %2247 = vmatprep.subr.bf16.mxu0 0
  %2248 = vmatpush1.bf16.msra.mxu0 %v2175
  %2249 = vmatprep.subr.bf16.mxu0 0
  %2250 = vmatpush1.bf16.msra.mxu0 %v2176
  %2251 = vmatprep.subr.bf16.mxu0 0
  %2252 = vmatpush1.bf16.msra.mxu0 %v2177
  %2253 = vmatprep.subr.bf16.mxu0 0
  %2254 = vmatpush1.bf16.msra.mxu0 %v2178
  %2255 = vmatprep.subr.bf16.mxu0 0
  %2256 = vmatpush1.bf16.msra.mxu0 %v2179
  %2257 = vmatprep.subr.bf16.mxu0 0
  %2258 = vmatpush1.bf16.msra.mxu0 %v2180
  %2259 = vmatprep.subr.bf16.mxu0 0
  %2260 = vmatpush1.bf16.msra.mxu0 %v2181
  %2261 = vmatprep.subr.bf16.mxu0 0
  %2262 = vmatpush1.bf16.msra.mxu0 %v2182
  %2263 = vmatprep.mubr.bf16.mxu0 %v1526
  %2264 = vmatmul.mubr.bf16.gmra.mrb[0].mxu0 %v1525
  %v2265 = vpop.f32.mrb[0].mxu0
  %v2266 = vadd.f32 %v2033, %v2265
  %v2267 = vpop.f32.mrb[0].mxu0
  %v2268 = vpop.f32.mrb[0].mxu0
  %v2269 = vadd.f32 %v2036, %v2268
  %v2270 = vpop.f32.mrb[0].mxu0
  %2271 = vdwg.mxu0
  %2272 = vmatprep.subr.bf16.mxu0 0
  %2273 = vmatpush1.bf16.msra.mxu0 %v2183
  %2274 = vmatprep.subr.bf16.mxu0 0
  %2275 = vmatpush1.bf16.msra.mxu0 %v2184
  %2276 = vmatprep.subr.bf16.mxu0 0
  %2277 = vmatpush1.bf16.msra.mxu0 %v2185
  %2278 = vmatprep.subr.bf16.mxu0 0
  %2279 = vmatpush1.bf16.msra.mxu0 %v2186
  %2280 = vmatprep.subr.bf16.mxu0 0
  %2281 = vmatpush1.bf16.msra.mxu0 %v2187
  %2282 = vmatprep.subr.bf16.mxu0 0
  %2283 = vmatpush1.bf16.msra.mxu0 %v2188
  %2284 = vmatprep.subr.bf16.mxu0 0
  %2285 = vmatpush1.bf16.msra.mxu0 %v2189
  %2286 = vmatprep.subr.bf16.mxu0 0
  %2287 = vmatpush1.bf16.msra.mxu0 %v2190
  %2288 = vmatprep.subr.bf16.mxu0 0
  %2289 = vmatpush1.bf16.msra.mxu0 %v2191
  %2290 = vmatprep.subr.bf16.mxu0 0
  %2291 = vmatpush1.bf16.msra.mxu0 %v2192
  %2292 = vmatprep.subr.bf16.mxu0 0
  %2293 = vmatpush1.bf16.msra.mxu0 %v2193
  %2294 = vmatprep.subr.bf16.mxu0 0
  %2295 = vmatpush1.bf16.msra.mxu0 %v2194
  %2296 = vmatprep.subr.bf16.mxu0 0
  %2297 = vmatpush1.bf16.msra.mxu0 %v2195
  %2298 = vmatprep.subr.bf16.mxu0 0
  %2299 = vmatpush1.bf16.msra.mxu0 %v2196
  %2300 = vmatprep.subr.bf16.mxu0 0
  %2301 = vmatpush1.bf16.msra.mxu0 %v2197
  %2302 = vmatprep.subr.bf16.mxu0 0
  %2303 = vmatpush1.bf16.msra.mxu0 %v2198
  %2304 = vmatprep.mubr.bf16.mxu0 %v1528
  %2305 = vmatmul.mubr.bf16.gmra.mrb[0].mxu0 %v1527
  %v2306 = vpop.f32.mrb[0].mxu0
  %v2307 = vadd.f32 %v2266, %v2306
  %v2308 = vpop.f32.mrb[0].mxu0
  %v2309 = vpop.f32.mrb[0].mxu0
  %v2310 = vadd.f32 %v2269, %v2309
  %v2311 = vpop.f32.mrb[0].mxu0
  %2312 = vdwg.mxu0
  %v2313 = vld [vmem:[%s6] sm:$0x1]
  %v2315 = vlaneseq
  %v2316 = vshrl.u32 %v2315, 7
  %v2317 = vsub.s32 0, %v2316
  %v2318 = vrot.slane %v2313, %v2317
  %v2320 = vadd.f32 %v2307, %v2318
  %v2321 = vadd.f32 %v2310, %v2318
  %2322 = vmax.xlane.f32.xlu0 %v2320
  %v2323 = vpop.xlane.xlu0 %2322
  %2324 = vmax.xlane.f32.xlu0 %v2321
  %v2325 = vpop.xlane.xlu0 %2324
  %v2326 = vsub.f32 %v2320, %v2323
  %v2327 = vsub.f32 %v2321, %v2325
  %v2328 = vmul.f32 %v2326, 1.442695
  %v2329 = vpow.pop %v2328
  %v2330 = vmul.f32 %v2327, 1.442695
  %v2331 = vpow.pop %v2330
  %2332 = vadd.xlane.f32.xlu0 %v2329
  %v2333 = vpop.xlane.xlu0 %2332
  %2334 = vadd.xlane.f32.xlu0 %v2331
  %v2335 = vpop.xlane.xlu0 %2334
  %v2336 = vlog2.pop %v2333
  %v2337 = vmul.f32 %v2336, 0.6931472
  %v2338 = vlog2.pop %v2335
  %v2339 = vmul.f32 %v2338, 0.6931472
  %v2340 = vsub.f32 %v2326, %v2337
  %v2341 = vsub.f32 %v2327, %v2339
  %2342 = vst [vmem:[%s7] sm:$0xff] %v2340
  %2343 = vst [vmem:[%s7 + $0x8] sm:$0xff] %v2341
  // Predicated region
  $region30: #{withaim_classifier_forward.1} parent=0 // pred_check
    _
  $region31: #{withaim_classifier_forward.1} parent=0 // pred_check_branch
    %2345 = sbr.rel (0) target = $region33
  $region32: #{withaim_classifier_forward.1} parent=0 // pred_region
    _
  $region33: #{withaim_classifier_forward.1} parent=0 // pred_fallthru
    _
  // Predicated region
  $region34: #{withaim_classifier_forward.1} parent=0 // pred_check
    _
  $region35: #{withaim_classifier_forward.1} parent=0 // pred_check_branch
    %2347 = sbr.rel (0) target = $region37
  $region36: #{withaim_classifier_forward.1} parent=0 // pred_region
    _
  $region37: #{withaim_classifier_forward.1} parent=0 // pred_fallthru
    _

</llo_original>
